<compile_context>
chip_gen: v7x
topology: tpu7x:2x2x1
jax: 0.10.0
libtpu: 0.0.40
codegen_flags: <defaults>
</compile_context>

<pallas_src>
import functools
import math

import jax
import jax.numpy as jnp
from jax import lax
from jax.experimental import pallas as pl
from jax.experimental.pallas import tpu as pltpu

_LN_EPS = 1e-6  # timm ViT LayerNorm eps


# ----------------------------- in-kernel helpers -----------------------------
def _erf(x):
    # Abramowitz & Stegun 7.1.26 rational approximation (|err| < 1.5e-7).
    # Uses only exp/abs/arithmetic so it lowers cleanly in Mosaic (EUP + VPU).
    a1, a2, a3, a4, a5 = (0.254829592, -0.284496736, 1.421413741,
                          -1.453152027, 1.061405429)
    p = 0.3275911
    sgn = jnp.where(x >= 0.0, 1.0, -1.0)
    ax = jnp.abs(x)
    t = 1.0 / (1.0 + p * ax)
    poly = ((((a5 * t + a4) * t + a3) * t + a2) * t + a1) * t
    return sgn * (1.0 - poly * jnp.exp(-ax * ax))


def _gelu(x):
    # Exact (erf-based) GELU, matching torch nn.GELU.
    return 0.5 * x * (1.0 + _erf(x * 0.7071067811865475))


def _layernorm(x, g, b):
    # Two-pass stats (var = E[(x - mu)^2]) -- safer than E[x^2]-mu^2 now that
    # GEMM inputs are bf16 and activations may develop large means at scale.
    mu = jnp.mean(x, axis=-1, keepdims=True)
    xc = x - mu
    var = jnp.mean(xc * xc, axis=-1, keepdims=True)
    return xc * lax.rsqrt(var + _LN_EPS) * g + b


def _round_up(v, m):
    return ((v + m - 1) // m) * m


def _choose_b_tile(n):
    # Keep >=2 steps on the "parallel" batch axis when possible so both
    # TensorCores (megacore / v7x) get work; cap the tile so activations +
    # intermediates stay well inside VMEM.
    if n <= 1:
        return 1
    return max(1, min(8, n // 2))


def _pick_vmem_limit():
    # Per-generation scoped-VMEM budget: ~75% of physical, capped at 96 MiB.
    # (v7x: 64 MiB physical -> ~48 MiB; v5e/v6e: 128 MiB -> 96 MiB.)
    try:
        phys = int(pltpu.get_tpu_info().vmem_capacity_bytes)
    except Exception:  # fall back conservatively if the query is unavailable
        phys = 64 * 1024 * 1024
    return min(int(phys * 3 // 4), 96 * 1024 * 1024)


# ------------------------------- Pallas kernels -------------------------------
def _embed_kernel(patches_ref, wp_ref, add_ref, cls_ref, out_ref):
    # patches_ref: (1, Sp, Cpp) bf16  im2col'd, *unnormalized* image patches
    # wp_ref     : (Cpp, D)     bf16  patch-embed weight with mean/std folded in
    # add_ref    : (Sp, D)      f32   bias_eff + pos_embed[1:] + token_type[1]
    # cls_ref    : (1, D)       f32   cls_token + pos_embed[0] + token_type[1]
    # out_ref    : (1, S_pad, D)      S_pad = round_up(Sp + 1, 8)
    sp, d = add_ref.shape
    s_pad = out_ref.shape[1]
    pe = jnp.dot(patches_ref[0], wp_ref[...],
                 preferred_element_type=jnp.float32) + add_ref[...]
    # Direct stores (no concatenate of the whole tile just to prepend one row).
    out_ref[0, 0:1, :] = cls_ref[...].astype(out_ref.dtype)
    out_ref[0, 1:1 + sp, :] = pe.astype(out_ref.dtype)
    if s_pad > 1 + sp:  # zero the padded sequence rows so downstream math is finite
        out_ref[0, 1 + sp:s_pad, :] = jnp.zeros((s_pad - 1 - sp, d), out_ref.dtype)


def _vit_blocks_kernel(x_ref, ln_ref, qkvw_ref, qkvb_ref, projw_ref, projb_ref,
                       fc1w_ref, fc1b_ref, fc2w_ref, fc2b_ref, fln_ref,
                       out_ref, x_scr, ctx_scr, *, num_heads, seq_len):
    # Grid: (batch-tile "parallel", depth "arbitrary").  x_scr carries the
    # residual stream (flattened to (B_TILE*S_pad, D)) across the depth axis;
    # the final LayerNorm is fused on the last depth step.
    li = pl.program_id(1)
    last = pl.num_programs(1) - 1

    bt, s_pad, d = x_ref.shape
    rows = bt * s_pad
    hd = d // num_heads
    scale = 1.0 / math.sqrt(hd)

    @pl.when(li == 0)
    def _():
        x_scr[...] = x_ref[...].reshape(rows, d).astype(jnp.float32)

    x = x_scr[...]                                      # (rows, D) f32

    # Hoisted (1, D) LayerNorm params for this block.
    g1 = ln_ref[0, 0:1, :]
    b1 = ln_ref[0, 1:2, :]
    g2 = ln_ref[0, 2:3, :]
    b2 = ln_ref[0, 3:4, :]

    # Additive key-padding bias (padded keys -> -1e30 before exp).  Hoisted.
    if s_pad > seq_len:
        kmask = jnp.where(
            lax.broadcasted_iota(jnp.int32, (1, 1, s_pad), 2) < seq_len,
            jnp.float32(0.0), jnp.float32(-1e30))
    else:
        kmask = None

    # ---------------- multi-head self-attention (mask = all ones) ----------------
    h = _layernorm(x, g1, b1)
    qkv = jnp.dot(h.astype(jnp.bfloat16), qkvw_ref[0],
                  preferred_element_type=jnp.float32) + qkvb_ref[0]  # (rows, 3D)

    for hi in range(num_heads):
        sl = slice(hi * hd, (hi + 1) * hd)
        qh = qkv[:, hi * hd:(hi + 1) * hd].reshape(bt, s_pad, hd)
        kh = qkv[:, d + hi * hd:d + (hi + 1) * hd].reshape(bt, s_pad, hd)
        vh = qkv[:, 2 * d + hi * hd:2 * d + (hi + 1) * hd].reshape(bt, s_pad, hd)
        sc = jnp.einsum("bqd,bkd->bqk", qh, kh,
                        preferred_element_type=jnp.float32) * scale
        if kmask is not None:
            sc = sc + kmask
        sc = sc - jnp.max(sc, axis=-1, keepdims=True)
        pr = jnp.exp(sc)
        pr = pr * pl.reciprocal(jnp.sum(pr, axis=-1, keepdims=True), approx=True)
        ctx_h = jnp.einsum("bqk,bkd->bqd", pr, vh,
                           preferred_element_type=jnp.float32)
        # Store the head's context directly into its lane slice (no concat).
        ctx_scr[:, sl] = ctx_h.reshape(rows, hd)

    ctx = ctx_scr[...]
    x = x + (jnp.dot(ctx.astype(jnp.bfloat16), projw_ref[0],
                     preferred_element_type=jnp.float32) + projb_ref[0])

    # ------------------------------------ MLP ------------------------------------
    h2 = _layernorm(x, g2, b2)
    z = _gelu(jnp.dot(h2.astype(jnp.bfloat16), fc1w_ref[0],
                      preferred_element_type=jnp.float32) + fc1b_ref[0])
    x = x + (jnp.dot(z.astype(jnp.bfloat16), fc2w_ref[0],
                     preferred_element_type=jnp.float32) + fc2b_ref[0])

    x_scr[...] = x

    @pl.when(li == last)
    def _():
        gf = fln_ref[0:1, :]
        bf = fln_ref[1:2, :]
        out_ref[...] = _layernorm(x, gf, bf).reshape(bt, s_pad, d).astype(out_ref.dtype)


# ---------------------------------- wrapper -----------------------------------
def image_feature_extractor_forward(x, params, *, patch_size, num_heads,
                                    b_tile=None):
    """x: (N, 3, H, W) float32. Returns feats (N, 1 + (H//P)*(W//P), D)."""
    n, c, hh, ww = x.shape
    p = patch_size
    gh, gw = hh // p, ww // p
    sp = gh * gw
    s = sp + 1
    s_pad = _round_up(s, 8)          # 8-aligned sublanes for the whole stream
    d = params["cls_token"].shape[-1]
    cpp = c * p * p
    assert d % num_heads == 0

    vmem_limit = _pick_vmem_limit()

    mean = jnp.asarray([0.485, 0.456, 0.406], jnp.float32)
    std = jnp.asarray([0.229, 0.224, 0.225], jnp.float32)

    # Fold (x - mean) / std into the patch-embedding weight/bias (no extra pass).
    wp = params["patch_w"]                      # (D, 3, P, P) torch Conv2d layout
    bp = params["patch_b"]                      # (D,)
    wp_eff = wp / std[None, :, None, None]
    b_eff = bp - jnp.sum(wp * (mean / std)[None, :, None, None], axis=(1, 2, 3))
    wp_flat = wp_eff.reshape(d, cpp).T.astype(jnp.bfloat16)   # (Cpp, D)

    # im2col (pure layout; equivalent to Conv2d(kernel=stride=P)); bf16 halves
    # the HBM read of the patches in the embed GEMM.
    patches = x.reshape(n, c, gh, p, gw, p).transpose(0, 2, 4, 1, 3, 5)
    patches = patches.reshape(n, sp, cpp).astype(jnp.bfloat16)

    tok = params["token_type"][1]               # (D,)  image_token_type_idx = 1
    pos = params["pos_embed"]                   # (S, D)
    add_patch = (b_eff[None, :] + pos[1:] + tok[None, :]).astype(jnp.float32)
    cls_row = (params["cls_token"] + pos[0] + tok)[None, :].astype(jnp.float32)

    embeds = pl.pallas_call(
        _embed_kernel,
        out_shape=jax.ShapeDtypeStruct((n, s_pad, d), jnp.float32),
        grid=(n,),
        in_specs=[
            pl.BlockSpec((1, sp, cpp), lambda i: (i, 0, 0)),
            pl.BlockSpec((cpp, d), lambda i: (0, 0)),
            pl.BlockSpec((sp, d), lambda i: (0, 0)),
            pl.BlockSpec((1, d), lambda i: (0, 0)),
        ],
        out_specs=pl.BlockSpec((1, s_pad, d), lambda i: (i, 0, 0)),
        compiler_params=pltpu.CompilerParams(
            dimension_semantics=("parallel",),
            vmem_limit_bytes=vmem_limit),
    )(patches, wp_flat, add_patch, cls_row)

    # ----------------------------- transformer blocks -----------------------------
    depth = params["qkv_w"].shape[0]
    dm = params["fc1_w"].shape[-1]

    if b_tile is None:
        b_tile = _choose_b_tile(n)
    n_tiles = (n + b_tile - 1) // b_tile
    n_pad = n_tiles * b_tile
    if n_pad > n:  # pad the batch so the batch tile divides it evenly
        embeds = jnp.concatenate(
            [embeds, jnp.zeros((n_pad - n, s_pad, d), embeds.dtype)], axis=0)

    ln_stack = jnp.stack([params["ln1_g"], params["ln1_b"],
                          params["ln2_g"], params["ln2_b"]], axis=1)   # (L, 4, D)
    fln = jnp.stack([params["norm_g"], params["norm_b"]], axis=0)      # (2, D)

    # bf16 weights (halves weight-streaming HBM traffic + VMEM); biases stay f32.
    qkv_w = params["qkv_w"].astype(jnp.bfloat16)
    proj_w = params["proj_w"].astype(jnp.bfloat16)
    fc1_w = params["fc1_w"].astype(jnp.bfloat16)
    fc2_w = params["fc2_w"].astype(jnp.bfloat16)

    kernel = functools.partial(_vit_blocks_kernel, num_heads=num_heads, seq_len=s)
    feats = pl.pallas_call(
        kernel,
        out_shape=jax.ShapeDtypeStruct((n_pad, s_pad, d), jnp.float32),
        grid=(n_tiles, depth),
        in_specs=[
            pl.BlockSpec((b_tile, s_pad, d), lambda b, l: (b, 0, 0)),
            pl.BlockSpec((1, 4, d), lambda b, l: (l, 0, 0)),
            pl.BlockSpec((1, d, 3 * d), lambda b, l: (l, 0, 0)),
            pl.BlockSpec((1, 1, 3 * d), lambda b, l: (l, 0, 0)),
            pl.BlockSpec((1, d, d), lambda b, l: (l, 0, 0)),
            pl.BlockSpec((1, 1, d), lambda b, l: (l, 0, 0)),
            pl.BlockSpec((1, d, dm), lambda b, l: (l, 0, 0)),
            pl.BlockSpec((1, 1, dm), lambda b, l: (l, 0, 0)),
            pl.BlockSpec((1, dm, d), lambda b, l: (l, 0, 0)),
            pl.BlockSpec((1, 1, d), lambda b, l: (l, 0, 0)),
            pl.BlockSpec((2, d), lambda b, l: (0, 0)),
        ],
        out_specs=pl.BlockSpec((b_tile, s_pad, d), lambda b, l: (b, 0, 0)),
        scratch_shapes=[pltpu.VMEM((b_tile * s_pad, d), jnp.float32),
                        pltpu.VMEM((b_tile * s_pad, d), jnp.float32)],
        compiler_params=pltpu.CompilerParams(
            dimension_semantics=("parallel", "arbitrary"),
            vmem_limit_bytes=vmem_limit),
    )(embeds, ln_stack,
      qkv_w, params["qkv_b"][:, None, :],
      proj_w, params["proj_b"][:, None, :],
      fc1_w, params["fc1_b"][:, None, :],
      fc2_w, params["fc2_b"][:, None, :],
      fln)
    return feats[:n, :s, :]


# ------------------------------ pure-JAX reference ------------------------------
def _reference(x, params, *, patch_size, num_heads):
    hp = lax.Precision.HIGHEST
    mean = jnp.asarray([0.485, 0.456, 0.406], jnp.float32).reshape(1, 3, 1, 1)
    std = jnp.asarray([0.229, 0.224, 0.225], jnp.float32).reshape(1, 3, 1, 1)
    xn = (x - mean) / std
    n, c, hh, ww = x.shape
    p = patch_size
    gh, gw = hh // p, ww // p
    sp = gh * gw
    d = params["cls_token"].shape[-1]

    patches = xn.reshape(n, c, gh, p, gw, p).transpose(0, 2, 4, 1, 3, 5)
    patches = patches.reshape(n, sp, c * p * p)
    wp_flat = params["patch_w"].reshape(d, -1).T
    emb = jnp.einsum("nsc,cd->nsd", patches, wp_flat, precision=hp) + params["patch_b"]
    cls = jnp.broadcast_to(params["cls_token"][None, None, :], (n, 1, d))
    emb = jnp.concatenate([cls, emb], axis=1) + params["pos_embed"][None]
    emb = emb + params["token_type"][1][None, None, :]

    def ln(z, g, b):
        mu = z.mean(-1, keepdims=True)
        var = ((z - mu) ** 2).mean(-1, keepdims=True)
        return (z - mu) / jnp.sqrt(var + _LN_EPS) * g + b

    hd = d // num_heads
    scale = hd ** -0.5
    xs = emb
    depth = params["qkv_w"].shape[0]
    for li in range(depth):
        h = ln(xs, params["ln1_g"][li], params["ln1_b"][li])
        qkv = jnp.einsum("nsd,de->nse", h, params["qkv_w"][li],
                         precision=hp) + params["qkv_b"][li]
        q, k, v = qkv[..., :d], qkv[..., d:2 * d], qkv[..., 2 * d:]
        q = q.reshape(n, -1, num_heads, hd)
        k = k.reshape(n, -1, num_heads, hd)
        v = v.reshape(n, -1, num_heads, hd)
        sc = jnp.einsum("nshd,nthd->nhst", q, k, precision=hp) * scale
        pr = jax.nn.softmax(sc, axis=-1)
        ctx = jnp.einsum("nhst,nthd->nshd", pr, v, precision=hp).reshape(n, -1, d)
        xs = xs + jnp.einsum("nsd,de->nse", ctx, params["proj_w"][li],
                             precision=hp) + params["proj_b"][li]
        h2 = ln(xs, params["ln2_g"][li], params["ln2_b"][li])
        z = jnp.einsum("nsd,de->nse", h2, params["fc1_w"][li],
                       precision=hp) + params["fc1_b"][li]
        z = 0.5 * z * (1.0 + lax.erf(z / jnp.float32(math.sqrt(2.0))))
        xs = xs + jnp.einsum("nse,ed->nsd", z, params["fc2_w"][li],
                             precision=hp) + params["fc2_b"][li]
    return ln(xs, params["norm_g"], params["norm_b"])


if __name__ == "__main__":
    # Small config consistent with the module architecture (real config is
    # ViT-B/32: hidden 768, depth 12, heads 12 — shrunk here per small-shape req).
    IMAGE_SIZE, PATCH, HIDDEN, DEPTH, HEADS, MLP = 256, 32, 128, 2, 4, 512
    N = 4                      # batch 4 -> B_TILE=2, 2 "parallel" grid steps
    GRID = IMAGE_SIZE // PATCH
    SP = GRID * GRID
    S = SP + 1

    key = jax.random.PRNGKey(0)
    ks = jax.random.split(key, 20)

    def rnd(k, shape, scale=0.02):
        return scale * jax.random.normal(k, shape, jnp.float32)

    params = dict(
        patch_w=rnd(ks[0], (HIDDEN, 3, PATCH, PATCH)),
        patch_b=rnd(ks[1], (HIDDEN,)),
        cls_token=rnd(ks[2], (HIDDEN,)),
        pos_embed=rnd(ks[3], (S, HIDDEN)),
        token_type=rnd(ks[4], (2, HIDDEN)),
        ln1_g=jnp.ones((DEPTH, HIDDEN), jnp.float32) + rnd(ks[5], (DEPTH, HIDDEN)),
        ln1_b=rnd(ks[6], (DEPTH, HIDDEN)),
        qkv_w=rnd(ks[7], (DEPTH, HIDDEN, 3 * HIDDEN)),
        qkv_b=rnd(ks[8], (DEPTH, 3 * HIDDEN)),
        proj_w=rnd(ks[9], (DEPTH, HIDDEN, HIDDEN)),
        proj_b=rnd(ks[10], (DEPTH, HIDDEN)),
        ln2_g=jnp.ones((DEPTH, HIDDEN), jnp.float32) + rnd(ks[11], (DEPTH, HIDDEN)),
        ln2_b=rnd(ks[12], (DEPTH, HIDDEN)),
        fc1_w=rnd(ks[13], (DEPTH, HIDDEN, MLP)),
        fc1_b=rnd(ks[14], (DEPTH, MLP)),
        fc2_w=rnd(ks[15], (DEPTH, MLP, HIDDEN)),
        fc2_b=rnd(ks[16], (DEPTH, HIDDEN)),
        norm_g=jnp.ones((HIDDEN,), jnp.float32),
        norm_b=jnp.zeros((HIDDEN,), jnp.float32),
    )
    x = jax.random.uniform(ks[17], (N, 3, IMAGE_SIZE, IMAGE_SIZE), jnp.float32)

    feats = image_feature_extractor_forward(x, params, patch_size=PATCH,
                                            num_heads=HEADS)
    feats = jax.block_until_ready(feats)

    ref = jax.block_until_ready(
        _reference(x, params, patch_size=PATCH, num_heads=HEADS))
    assert feats.shape == (N, S, HIDDEN), feats.shape
    max_err = float(jnp.max(jnp.abs(feats - ref)))
    # Tolerance reflects bf16 weights/activations in the GEMMs (f32 accumulate).
    assert bool(jnp.allclose(feats, ref, atol=3e-2, rtol=3e-2)), max_err

    print("KERNEL_OK")
</pallas_src>

<mosaic_0001>
module attributes {stable_mosaic.version = 11 : i64} {
  func.func @_embed_kernel(%arg0: i32, %arg1: memref<1x64x3072xbf16, #tpu.memory_space<vmem>>, %arg2: memref<3072x128xbf16, #tpu.memory_space<vmem>>, %arg3: memref<64x128xf32, #tpu.memory_space<vmem>>, %arg4: memref<1x128xf32, #tpu.memory_space<vmem>>, %arg5: memref<1x72x128xf32, #tpu.memory_space<vmem>>) attributes {dimension_semantics = [#tpu.dimension_semantics<parallel>], iteration_bounds = array<i64: 4>, scalar_prefetch = 0 : i64, scratch_operands = 0 : i64, tpu.core_type = #tpu.core_type<tc>, window_params = [{transform_indices = @transform_0, window_bounds = array<i64: 1, 64, 3072>}, {pipeline_mode = #tpu.pipeline_mode<synchronous>, transform_indices = @transform_1, window_bounds = array<i64: 3072, 128>}, {pipeline_mode = #tpu.pipeline_mode<synchronous>, transform_indices = @transform_2, window_bounds = array<i64: 64, 128>}, {pipeline_mode = #tpu.pipeline_mode<synchronous>, transform_indices = @transform_3, window_bounds = array<i64: 1, 128>}, {transform_indices = @transform_4, window_bounds = array<i64: 1, 72, 128>}]} {
    %c0 = arith.constant 0 : index
    %c0_0 = arith.constant 0 : index
    %c0_1 = arith.constant 0 : index
    %0 = vector.load %arg1[%c0, %c0_0, %c0_1] : memref<1x64x3072xbf16, #tpu.memory_space<vmem>>, vector<1x64x3072xbf16>
    %1 = vector.shape_cast %0 : vector<1x64x3072xbf16> to vector<64x3072xbf16>
    %c0_2 = arith.constant 0 : index
    %c0_3 = arith.constant 0 : index
    %2 = vector.load %arg2[%c0_2, %c0_3] : memref<3072x128xbf16, #tpu.memory_space<vmem>>, vector<3072x128xbf16>
    %cst = arith.constant dense<0.000000e+00> : vector<64x128xf32>
    %3 = tpu.matmul %1, %2, %cst {dimension_numbers = #tpu.dot_dimension_numbers<[1], [0], [0], [1], [0, 0, 1, 1], [], []>} : vector<64x3072xbf16>, vector<3072x128xbf16>, vector<64x128xf32> -> vector<64x128xf32>
    %c0_4 = arith.constant 0 : index
    %c0_5 = arith.constant 0 : index
    %4 = vector.load %arg3[%c0_4, %c0_5] : memref<64x128xf32, #tpu.memory_space<vmem>>, vector<64x128xf32>
    %5 = arith.addf %3, %4 : vector<64x128xf32>
    %c0_6 = arith.constant 0 : index
    %c0_7 = arith.constant 0 : index
    %6 = vector.load %arg4[%c0_6, %c0_7] : memref<1x128xf32, #tpu.memory_space<vmem>>, vector<1x128xf32>
    %c0_8 = arith.constant 0 : index
    %c0_9 = arith.constant 0 : index
    %c0_10 = arith.constant 0 : index
    %7 = vector.load %arg5[%c0_8, %c0_9, %c0_10] : memref<1x72x128xf32, #tpu.memory_space<vmem>>, vector<1x1x128xf32>
    %8 = vector.shape_cast %7 : vector<1x1x128xf32> to vector<1x128xf32>
    %9 = vector.shape_cast %6 : vector<1x128xf32> to vector<1x1x128xf32>
    tpu.vector_store %arg5[%c0_8, %c0_9, %c0_10], %9 {strides = array<i32>} : memref<1x72x128xf32, #tpu.memory_space<vmem>>, vector<1x1x128xf32>,
    %c0_11 = arith.constant 0 : index
    %c1 = arith.constant 1 : index
    %c0_12 = arith.constant 0 : index
    %10 = vector.load %arg5[%c0_11, %c1, %c0_12] : memref<1x72x128xf32, #tpu.memory_space<vmem>>, vector<1x64x128xf32>
    %11 = vector.shape_cast %10 : vector<1x64x128xf32> to vector<64x128xf32>
    %12 = vector.shape_cast %5 : vector<64x128xf32> to vector<1x64x128xf32>
    tpu.vector_store %arg5[%c0_11, %c1, %c0_12], %12 {strides = array<i32>} : memref<1x72x128xf32, #tpu.memory_space<vmem>>, vector<1x64x128xf32>,
    %cst_13 = arith.constant 0.000000e+00 : f32
    %13 = vector.broadcast %cst_13 : f32 to vector<7x128xf32>
    %c0_14 = arith.constant 0 : index
    %c65 = arith.constant 65 : index
    %c0_15 = arith.constant 0 : index
    %14 = vector.load %arg5[%c0_14, %c65, %c0_15] : memref<1x72x128xf32, #tpu.memory_space<vmem>>, vector<1x7x128xf32>
    %15 = vector.shape_cast %14 : vector<1x7x128xf32> to vector<7x128xf32>
    %16 = vector.shape_cast %13 : vector<7x128xf32> to vector<1x7x128xf32>
    tpu.vector_store %arg5[%c0_14, %c65, %c0_15], %16 {strides = array<i32>} : memref<1x72x128xf32, #tpu.memory_space<vmem>>, vector<1x7x128xf32>,
    return
  }
  func.func @transform_0(%arg0: i32) -> (i32, i32, i32) {
    %c0_i32 = arith.constant 0 : i32
    %c0_i32_0 = arith.constant 0 : i32
    %c0_i32_1 = arith.constant 0 : i32
    return %arg0, %c0_i32, %c0_i32_0 : i32, i32, i32
  }
  func.func @transform_1(%arg0: i32) -> (i32, i32) {
    %c0_i32 = arith.constant 0 : i32
    %c0_i32_0 = arith.constant 0 : i32
    %c0_i32_1 = arith.constant 0 : i32
    return %c0_i32, %c0_i32_0 : i32, i32
  }
  func.func @transform_2(%arg0: i32) -> (i32, i32) {
    %c0_i32 = arith.constant 0 : i32
    %c0_i32_0 = arith.constant 0 : i32
    %c0_i32_1 = arith.constant 0 : i32
    return %c0_i32, %c0_i32_0 : i32, i32
  }
  func.func @transform_3(%arg0: i32) -> (i32, i32) {
    %c0_i32 = arith.constant 0 : i32
    %c0_i32_0 = arith.constant 0 : i32
    %c0_i32_1 = arith.constant 0 : i32
    return %c0_i32, %c0_i32_0 : i32, i32
  }
  func.func @transform_4(%arg0: i32) -> (i32, i32, i32) {
    %c0_i32 = arith.constant 0 : i32
    %c0_i32_0 = arith.constant 0 : i32
    %c0_i32_1 = arith.constant 0 : i32
    return %arg0, %c0_i32, %c0_i32_0 : i32, i32, i32
  }
}

</mosaic_0001>

<llo_original>
// kernel: tpu_custom_call.1
$region0: #{tpu_custom_call.1}
  #allocation0 [shape = 'u32[]', space=smem, size = 0x4, offset = 0x4, fixed_abs, tag = 'smem constant byte address 0x4 - core index']
  #allocation1 [shape = 'u32[144,128]{1,0:T(1,128)}', space=vmem, size = 0x12000, scoped, tag = 'internal scratch']
  %s0 = inlined_call_operand.hbm [shape: bf16[4,64,3072], index: 0, kind: input, shape index: {}]
  %s1 = inlined_call_operand.hbm [shape: bf16[3072,128], index: 1, kind: input, shape index: {}]
  %s2 = inlined_call_operand.hbm [shape: f32[64,128], index: 2, kind: input, shape index: {}]
  %s3 = inlined_call_operand.hbm [shape: f32[1,128], index: 3, kind: input, shape index: {}]
  %s4 = inlined_call_operand.hbm [shape: f32[4,72,128], index: 4, kind: output, shape index: {}]
  %s5 = sld [smem:[#allocation0]]
  $region65: #{tpu_custom_call.1} parent=0
    _
  %s7 = ssub.s32 1, %s5
  %s8 = scalar_select 0, %s7, %s5
  $region1: #{tpu_custom_call.1} parent=0
    #allocation2 [shape = 'u8[786432]{0}', space=vmem, size = 0xc0000, scoped, tag = 'input window, operand 0']
    #allocation3 [shape = 's32[2]{0}', space=sflag, size = 0x8, scoped, tag = 'scoped memory for tpu_custom_call.1']
    #allocation4 [shape = 's32[2]{0}', space=sflag, size = 0x8, scoped, tag = 'scoped memory for tpu_custom_call.1']
    #allocation5 [shape = 'u8[786432]{0}', space=vmem, size = 0xc0000, scoped, tag = 'input window, operand 1, single buffered']
    #allocation6 [shape = 's32[1]{0}', space=sflag, size = 0x4, scoped, tag = 'scoped memory for tpu_custom_call.1']
    #allocation7 [shape = 'u8[32768]{0}', space=vmem, size = 0x8000, scoped, tag = 'input window, operand 2, single buffered']
    #allocation8 [shape = 'u8[512]{0}', space=vmem, size = 0x400, scoped, tag = 'input window, operand 3, single buffered']
    #allocation9 [shape = 's32[1]{0}', space=sflag, size = 0x4, scoped, tag = 'scoped memory for tpu_custom_call.1']
    #allocation10 [shape = 'u8[73728]{0}', space=vmem, size = 0x12000, scoped, tag = 'output window, operand 0']
    %9 = vsyncpa [#allocation3], 0
    %s10 = scalar_lea.sflag [#allocation3], 1
    %11 = vsyncpa %s10, 0
    %12 = vsyncpa [#allocation6], 0
    %13 = vsyncpa [#allocation9], 0
    %14 = vsyncpa [#allocation4], 0
    %s15 = scalar_lea.sflag [#allocation4], 1
    %16 = vsyncpa %s15, 0
    loop: start=0, step=1, limit=6
    $region2: #{tpu_custom_call.1} parent=1 // loop_pre_header
      _
    $region3: #{tpu_custom_call.1} parent=1 // loop_header
      %s18 = sphi 0, %s22
      %p19 = scmp.ge.s32.totalorder %s18, 6
      %s28 = sphi 0, %s30
      %s31 = sphi 0, %s28
      %s32 = sphi 0, %s31
      %s48 = sphi 0, %s32
      %s52 = sphi 0, %s52
      %s54 = sphi 0, %s52
      %s55 = sphi 0, %s54
      %s69 = sphi 0, %s55
      %s73 = sphi 0, %s73
      %s75 = sphi 0, %s73
      %s76 = sphi 0, %s75
      %s90 = sphi 0, %s76
      %s94 = sphi 0, %s94
      %s96 = sphi 0, %s94
      %s97 = sphi 0, %s96
      %s111 = sphi 0, %s97
      %s117 = sphi 0, %s119
      %s120 = sphi 0, %s117
      %s121 = sphi 0, %s120
      %s137 = sphi 0, %s121
    $region4: #{tpu_custom_call.1} parent=1 // loop_header_branch
      %21 = sbr.rel (%p19) target = $region8
    $region5: #{tpu_custom_call.1} parent=1 // loop_body
      %s23 = ssub.s32 %s18, 1
      %s24 = ssub.s32 %s18, 2
      %s25 = sadd.s32 %s18, 1
      %s26 = ssub.s32 %s18, %s25
      %p27 = scmp.eq.s32.totalorder %s26, 0
      %s29 = sadd.s32 %s28, 1
      %s30 = scalar_select %p27, %s28, %s29
      %p33 = pneg %p27
      %p34 = scmp.eq.s32.totalorder %s18, 3
      %p35 = por %p33, %p34
      %p36 = scmp.ne.s32.totalorder %s28, %s31
      %p37 = scmp.eq.s32.totalorder %s18, 0
      %p38 = por %p36, %p37
      %p39 = scmp.ne.s32.totalorder %s28, %s31
      %p40 = scmp.eq.s32.totalorder %s23, 3
      %p41 = por %p39, %p40
      %p42 = scmp.ne.s32.totalorder %s31, %s32
      %p43 = scmp.eq.s32.totalorder %s23, 0
      %p44 = por %p42, %p43
      %p45 = scmp.ne.s32.totalorder %s31, %s32
      %p46 = scmp.eq.s32.totalorder %s24, 3
      %p47 = por %p45, %p46
      %p49 = scmp.ne.s32.totalorder %s32, %s48
      %p50 = scmp.eq.s32.totalorder %s24, 0
      %p51 = por %p49, %p50
      %s53 = sadd.s32 %s52, 1
      %p56 = scmp.eq.s32.totalorder %s18, 3
      %p57 = scmp.ne.s32.totalorder %s52, %s54
      %p58 = scmp.eq.s32.totalorder %s18, 0
      %p59 = por %p57, %p58
      %p60 = scmp.ne.s32.totalorder %s52, %s54
      %p61 = scmp.eq.s32.totalorder %s23, 3
      %p62 = por %p60, %p61
      %p63 = scmp.ne.s32.totalorder %s54, %s55
      %p64 = scmp.eq.s32.totalorder %s23, 0
      %p65 = por %p63, %p64
      %p66 = scmp.ne.s32.totalorder %s54, %s55
      %p67 = scmp.eq.s32.totalorder %s24, 3
      %p68 = por %p66, %p67
      %p70 = scmp.ne.s32.totalorder %s55, %s69
      %p71 = scmp.eq.s32.totalorder %s24, 0
      %p72 = por %p70, %p71
      %s74 = sadd.s32 %s73, 1
      %p77 = scmp.eq.s32.totalorder %s18, 3
      %p78 = scmp.ne.s32.totalorder %s73, %s75
      %p79 = scmp.eq.s32.totalorder %s18, 0
      %p80 = por %p78, %p79
      %p81 = scmp.ne.s32.totalorder %s73, %s75
      %p82 = scmp.eq.s32.totalorder %s23, 3
      %p83 = por %p81, %p82
      %p84 = scmp.ne.s32.totalorder %s75, %s76
      %p85 = scmp.eq.s32.totalorder %s23, 0
      %p86 = por %p84, %p85
      %p87 = scmp.ne.s32.totalorder %s75, %s76
      %p88 = scmp.eq.s32.totalorder %s24, 3
      %p89 = por %p87, %p88
      %p91 = scmp.ne.s32.totalorder %s76, %s90
      %p92 = scmp.eq.s32.totalorder %s24, 0
      %p93 = por %p91, %p92
      %s95 = sadd.s32 %s94, 1
      %p98 = scmp.eq.s32.totalorder %s18, 3
      %p99 = scmp.ne.s32.totalorder %s94, %s96
      %p100 = scmp.eq.s32.totalorder %s18, 0
      %p101 = por %p99, %p100
      %p102 = scmp.ne.s32.totalorder %s94, %s96
      %p103 = scmp.eq.s32.totalorder %s23, 3
      %p104 = por %p102, %p103
      %p105 = scmp.ne.s32.totalorder %s96, %s97
      %p106 = scmp.eq.s32.totalorder %s23, 0
      %p107 = por %p105, %p106
      %p108 = scmp.ne.s32.totalorder %s96, %s97
      %p109 = scmp.eq.s32.totalorder %s24, 3
      %p110 = por %p108, %p109
      %p112 = scmp.ne.s32.totalorder %s97, %s111
      %p113 = scmp.eq.s32.totalorder %s24, 0
      %p114 = por %p112, %p113
      %s115 = ssub.s32 %s18, %s25
      %p116 = scmp.eq.s32.totalorder %s115, 0
      %s118 = sadd.s32 %s117, 1
      %s119 = scalar_select %p116, %s117, %s118
      %p122 = pneg %p116
      %p123 = scmp.eq.s32.totalorder %s18, 3
      %p124 = por %p122, %p123
      %p125 = scmp.ne.s32.totalorder %s117, %s120
      %p126 = scmp.eq.s32.totalorder %s18, 0
      %p127 = por %p125, %p126
      %p128 = scmp.ne.s32.totalorder %s117, %s120
      %p129 = scmp.eq.s32.totalorder %s23, 3
      %p130 = por %p128, %p129
      %p131 = scmp.ne.s32.totalorder %s120, %s121
      %p132 = scmp.eq.s32.totalorder %s23, 0
      %p133 = por %p131, %p132
      %p134 = scmp.ne.s32.totalorder %s120, %s121
      %p135 = scmp.eq.s32.totalorder %s24, 3
      %p136 = por %p134, %p135
      %p138 = scmp.ne.s32.totalorder %s121, %s137
      %p139 = scmp.eq.s32.totalorder %s24, 0
      %p140 = por %p138, %p139
      %p141 = scmp.le.s32.totalorder 1, %s18
      %p142 = scmp.lt.s32.totalorder %s18, 5
      %p143 = pnand %p141, %p142
      %p144 = pneg %p143
      // Predicated region
      $region9: #{tpu_custom_call.1} parent=5 // pred_check
        _
      $region10: #{tpu_custom_call.1} parent=5 // pred_check_branch
        %146 = sbr.rel (%p143) target = $region12
      $region11: #{tpu_custom_call.1} parent=5 // pred_region
        %s147 = ssub.s32 %s18, 1
        // Predicated region
        $region13: #{tpu_custom_call.1} parent=11 // pred_check
          %p148 = pneg %p65
        $region14: #{tpu_custom_call.1} parent=11 // pred_check_branch
          %150 = sbr.rel (%p148) target = $region16
        $region15: #{tpu_custom_call.1} parent=11 // pred_region
          %s152 = ssub.s32 24576, 24576
          %153 = vsyncadd [#allocation6], %s152
          %s154 = sshll.u32 [#allocation5], 4
          %s155 = int_to_ptr.vmem [resolvable:$true] %s154
          %160 = dma.hbm_to_vmem [thread:$0]  %s1, 24576, %s155, [#allocation6], 64, 64, 4
        $region16: #{tpu_custom_call.1} parent=11 // pred_fallthru
          _
        // Predicated region
        $region17: #{tpu_custom_call.1} parent=11 // pred_check
          %p161 = pneg %p86
        $region18: #{tpu_custom_call.1} parent=11 // pred_check_branch
          %163 = sbr.rel (%p161) target = $region20
        $region19: #{tpu_custom_call.1} parent=11 // pred_region
          %s165 = ssub.s32 1024, 1024
          %166 = vsyncadd [#allocation6], %s165
          %s167 = sshll.u32 [#allocation7], 4
          %s168 = int_to_ptr.vmem [resolvable:$true] %s167
          %173 = dma.hbm_to_vmem [thread:$0]  %s2, 1024, %s168, [#allocation6], 128, 128, 8
        $region20: #{tpu_custom_call.1} parent=11 // pred_fallthru
          _
        // Predicated region
        $region21: #{tpu_custom_call.1} parent=11 // pred_check
          %p174 = pneg %p107
        $region22: #{tpu_custom_call.1} parent=11 // pred_check_branch
          %176 = sbr.rel (%p174) target = $region24
        $region23: #{tpu_custom_call.1} parent=11 // pred_region
          %s178 = ssub.s32 16, 16
          %179 = vsyncadd [#allocation9], %s178
          %s181 = sshll.u32 [#allocation8], 4
          %s182 = int_to_ptr.vmem [resolvable:$true] %s181
          %184 = dma.hbm_to_vmem [thread:$0]  %s3, 16, %s182, [#allocation9]
        $region24: #{tpu_custom_call.1} parent=11 // pred_fallthru
          _
      $region12: #{tpu_custom_call.1} parent=5 // pred_fallthru
        _
      %p185 = scmp.lt.s32.totalorder %s18, 4
      // Predicated region
      $region25: #{tpu_custom_call.1} parent=5 // pred_check
        %p186 = pneg %p185
      $region26: #{tpu_custom_call.1} parent=5 // pred_check_branch
        %188 = sbr.rel (%p186) target = $region28
      $region27: #{tpu_custom_call.1} parent=5 // pred_region
        // Predicated region
        $region29: #{tpu_custom_call.1} parent=27 // pred_check
          %p189 = pneg %p38
        $region30: #{tpu_custom_call.1} parent=27 // pred_check_branch
          %191 = sbr.rel (%p189) target = $region32
        $region31: #{tpu_custom_call.1} parent=27 // pred_region
          %s192 = sand.u32 %s28, 1
          %s193 = scalar_lea.sflag [#allocation3], %s192
          %s194 = sand.u32 %s28, 1
          %s195 = smul.addr %s194, 768
          %s196 = scalar_lea.vmem [#allocation2], %s195
          %s198 = ssub.s32 12288, 12288
          %199 = vsyncadd %s193, %s198
          %s200 = smul.addr %s18, 192
          %s201 = smul.addr %s200, 64
          %s202 = scalar_lea.hbm %s0, %s201
          %s203 = sshll.u32 %s196, 4
          %s204 = int_to_ptr.vmem [resolvable:$true] %s203
          %209 = dma.hbm_to_vmem [thread:$0]  %s202, 12288, %s204, %s193, 1536, 1536, 96
        $region32: #{tpu_custom_call.1} parent=27 // pred_fallthru
          _
      $region28: #{tpu_custom_call.1} parent=5 // pred_fallthru
        _
      %p210 = scmp.le.s32.totalorder 1, %s18
      %p211 = scmp.lt.s32.totalorder %s18, 5
      %p212 = pnand %p210, %p211
      %p213 = pneg %p212
      // Predicated region
      $region33: #{tpu_custom_call.1} parent=5 // pred_check
        _
      $region34: #{tpu_custom_call.1} parent=5 // pred_check_branch
        %215 = sbr.rel (%p212) target = $region36
      $region35: #{tpu_custom_call.1} parent=5 // pred_region
        %s216 = ssub.s32 %s18, 1
        %s217 = sand.u32 %s31, 1
        %s218 = scalar_lea.sflag [#allocation3], %s217
        %s219 = sand.u32 %s31, 1
        %s220 = smul.addr %s219, 768
        %s221 = scalar_lea.vmem [#allocation2], %s220
        // Predicated region
        $region37: #{tpu_custom_call.1} parent=35 // pred_check
          %p222 = pneg %p44
        $region38: #{tpu_custom_call.1} parent=35 // pred_check_branch
          %224 = sbr.rel (%p222) target = $region40
        $region39: #{tpu_custom_call.1} parent=35 // pred_region
          %225 = dma.done %s218, 12288
        $region40: #{tpu_custom_call.1} parent=35 // pred_fallthru
          _
        // Predicated region
        $region41: #{tpu_custom_call.1} parent=35 // pred_check
          %p226 = pneg %p65
        $region42: #{tpu_custom_call.1} parent=35 // pred_check_branch
          %228 = sbr.rel (%p226) target = $region44
        $region43: #{tpu_custom_call.1} parent=35 // pred_region
          %229 = dma.done [#allocation6], 24576
        $region44: #{tpu_custom_call.1} parent=35 // pred_fallthru
          _
        // Predicated region
        $region45: #{tpu_custom_call.1} parent=35 // pred_check
          %p230 = pneg %p86
        $region46: #{tpu_custom_call.1} parent=35 // pred_check_branch
          %232 = sbr.rel (%p230) target = $region48
        $region47: #{tpu_custom_call.1} parent=35 // pred_region
          %233 = dma.done [#allocation6], 1024
        $region48: #{tpu_custom_call.1} parent=35 // pred_fallthru
          _
        // Predicated region
        $region49: #{tpu_custom_call.1} parent=35 // pred_check
          %p234 = pneg %p107
        $region50: #{tpu_custom_call.1} parent=35 // pred_check_branch
          %236 = sbr.rel (%p234) target = $region52
        $region51: #{tpu_custom_call.1} parent=35 // pred_region
          %237 = dma.done [#allocation9], 16
        $region52: #{tpu_custom_call.1} parent=35 // pred_fallthru
          _
        %s238 = sand.u32 %s31, 1
        %s239 = scalar_lea.sflag [#allocation3], %s238
        %s240 = sand.u32 %s31, 1
        %s241 = smul.addr %s240, 768
        %s242 = scalar_lea.vmem [#allocation2], %s241
        %p243 = pneg %p44
        %p244 = pneg %p41
        %p245 = pneg %p65
        %p246 = pneg %p62
        %p247 = pneg %p86
        %p248 = pneg %p83
        %p249 = pneg %p107
        %p250 = pneg %p104
        %p251 = pneg %p133
        %p252 = pneg %p130
        %s253 = sand.u32 %s120, 1
        %s254 = scalar_lea.sflag [#allocation4], %s253
        %s255 = sand.u32 %s120, 1
        %s256 = smul.addr %s255, 72
        %s257 = scalar_lea.vmem [#allocation10], %s256
        %v259 = vld [vmem:[%s221] sm:$0xff]
        %v260 = vld [vmem:[%s221 + $0x8] sm:$0xff]
        %v261 = vld [vmem:[%s221 + $0x10] sm:$0xff]
        %v262 = vld [vmem:[%s221 + $0x18] sm:$0xff]
        %v263 = vld [vmem:[%s221 + $0x20] sm:$0xff]
        %v264 = vld [vmem:[%s221 + $0x28] sm:$0xff]
        %v265 = vld [vmem:[%s221 + $0x30] sm:$0xff]
        %v266 = vld [vmem:[%s221 + $0x38] sm:$0xff]
        %v267 = vld [vmem:[%s221 + $0x40] sm:$0xff]
        %v268 = vld [vmem:[%s221 + $0x48] sm:$0xff]
        %v269 = vld [vmem:[%s221 + $0x50] sm:$0xff]
        %v270 = vld [vmem:[%s221 + $0x58] sm:$0xff]
        %v271 = vld [vmem:[%s221 + $0x60] sm:$0xff]
        %v272 = vld [vmem:[%s221 + $0x68] sm:$0xff]
        %v273 = vld [vmem:[%s221 + $0x70] sm:$0xff]
        %v274 = vld [vmem:[%s221 + $0x78] sm:$0xff]
        %v275 = vld [vmem:[%s221 + $0x80] sm:$0xff]
        %v276 = vld [vmem:[%s221 + $0x88] sm:$0xff]
        %v277 = vld [vmem:[%s221 + $0x90] sm:$0xff]
        %v278 = vld [vmem:[%s221 + $0x98] sm:$0xff]
        %v279 = vld [vmem:[%s221 + $0xa0] sm:$0xff]
        %v280 = vld [vmem:[%s221 + $0xa8] sm:$0xff]
        %v281 = vld [vmem:[%s221 + $0xb0] sm:$0xff]
        %v282 = vld [vmem:[%s221 + $0xb8] sm:$0xff]
        %v283 = vld [vmem:[%s221 + $0xc0] sm:$0xff]
        %v284 = vld [vmem:[%s221 + $0xc8] sm:$0xff]
        %v285 = vld [vmem:[%s221 + $0xd0] sm:$0xff]
        %v286 = vld [vmem:[%s221 + $0xd8] sm:$0xff]
        %v287 = vld [vmem:[%s221 + $0xe0] sm:$0xff]
        %v288 = vld [vmem:[%s221 + $0xe8] sm:$0xff]
        %v289 = vld [vmem:[%s221 + $0xf0] sm:$0xff]
        %v290 = vld [vmem:[%s221 + $0xf8] sm:$0xff]
        %v291 = vld [vmem:[%s221 + $0x100] sm:$0xff]
        %v292 = vld [vmem:[%s221 + $0x108] sm:$0xff]
        %v293 = vld [vmem:[%s221 + $0x110] sm:$0xff]
        %v294 = vld [vmem:[%s221 + $0x118] sm:$0xff]
        %v295 = vld [vmem:[%s221 + $0x120] sm:$0xff]
        %v296 = vld [vmem:[%s221 + $0x128] sm:$0xff]
        %v297 = vld [vmem:[%s221 + $0x130] sm:$0xff]
        %v298 = vld [vmem:[%s221 + $0x138] sm:$0xff]
        %v299 = vld [vmem:[%s221 + $0x140] sm:$0xff]
        %v300 = vld [vmem:[%s221 + $0x148] sm:$0xff]
        %v301 = vld [vmem:[%s221 + $0x150] sm:$0xff]
        %v302 = vld [vmem:[%s221 + $0x158] sm:$0xff]
        %v303 = vld [vmem:[%s221 + $0x160] sm:$0xff]
        %v304 = vld [vmem:[%s221 + $0x168] sm:$0xff]
        %v305 = vld [vmem:[%s221 + $0x170] sm:$0xff]
        %v306 = vld [vmem:[%s221 + $0x178] sm:$0xff]
        %v307 = vld [vmem:[%s221 + $0x180] sm:$0xff]
        %v308 = vld [vmem:[%s221 + $0x188] sm:$0xff]
        %v309 = vld [vmem:[%s221 + $0x190] sm:$0xff]
        %v310 = vld [vmem:[%s221 + $0x198] sm:$0xff]
        %v311 = vld [vmem:[%s221 + $0x1a0] sm:$0xff]
        %v312 = vld [vmem:[%s221 + $0x1a8] sm:$0xff]
        %v313 = vld [vmem:[%s221 + $0x1b0] sm:$0xff]
        %v314 = vld [vmem:[%s221 + $0x1b8] sm:$0xff]
        %v315 = vld [vmem:[%s221 + $0x1c0] sm:$0xff]
        %v316 = vld [vmem:[%s221 + $0x1c8] sm:$0xff]
        %v317 = vld [vmem:[%s221 + $0x1d0] sm:$0xff]
        %v318 = vld [vmem:[%s221 + $0x1d8] sm:$0xff]
        %v319 = vld [vmem:[%s221 + $0x1e0] sm:$0xff]
        %v320 = vld [vmem:[%s221 + $0x1e8] sm:$0xff]
        %v321 = vld [vmem:[%s221 + $0x1f0] sm:$0xff]
        %v322 = vld [vmem:[%s221 + $0x1f8] sm:$0xff]
        %v323 = vld [vmem:[%s221 + $0x200] sm:$0xff]
        %v324 = vld [vmem:[%s221 + $0x208] sm:$0xff]
        %v325 = vld [vmem:[%s221 + $0x210] sm:$0xff]
        %v326 = vld [vmem:[%s221 + $0x218] sm:$0xff]
        %v327 = vld [vmem:[%s221 + $0x220] sm:$0xff]
        %v328 = vld [vmem:[%s221 + $0x228] sm:$0xff]
        %v329 = vld [vmem:[%s221 + $0x230] sm:$0xff]
        %v330 = vld [vmem:[%s221 + $0x238] sm:$0xff]
        %v331 = vld [vmem:[%s221 + $0x240] sm:$0xff]
        %v332 = vld [vmem:[%s221 + $0x248] sm:$0xff]
        %v333 = vld [vmem:[%s221 + $0x250] sm:$0xff]
        %v334 = vld [vmem:[%s221 + $0x258] sm:$0xff]
        %v335 = vld [vmem:[%s221 + $0x260] sm:$0xff]
        %v336 = vld [vmem:[%s221 + $0x268] sm:$0xff]
        %v337 = vld [vmem:[%s221 + $0x270] sm:$0xff]
        %v338 = vld [vmem:[%s221 + $0x278] sm:$0xff]
        %v339 = vld [vmem:[%s221 + $0x280] sm:$0xff]
        %v340 = vld [vmem:[%s221 + $0x288] sm:$0xff]
        %v341 = vld [vmem:[%s221 + $0x290] sm:$0xff]
        %v342 = vld [vmem:[%s221 + $0x298] sm:$0xff]
        %v343 = vld [vmem:[%s221 + $0x2a0] sm:$0xff]
        %v344 = vld [vmem:[%s221 + $0x2a8] sm:$0xff]
        %v345 = vld [vmem:[%s221 + $0x2b0] sm:$0xff]
        %v346 = vld [vmem:[%s221 + $0x2b8] sm:$0xff]
        %v347 = vld [vmem:[%s221 + $0x2c0] sm:$0xff]
        %v348 = vld [vmem:[%s221 + $0x2c8] sm:$0xff]
        %v349 = vld [vmem:[%s221 + $0x2d0] sm:$0xff]
        %v350 = vld [vmem:[%s221 + $0x2d8] sm:$0xff]
        %v351 = vld [vmem:[%s221 + $0x2e0] sm:$0xff]
        %v352 = vld [vmem:[%s221 + $0x2e8] sm:$0xff]
        %v353 = vld [vmem:[%s221 + $0x2f0] sm:$0xff]
        %v354 = vld [vmem:[%s221 + $0x2f8] sm:$0xff]
        %v355 = vld [vmem:[#allocation5] sm:$0xf]
        %v356 = vld [vmem:[#allocation5 + $0x4] sm:$0xf]
        %v357 = vld [vmem:[#allocation5 + $0x8] sm:$0xf]
        %v358 = vld [vmem:[#allocation5 + $0xc] sm:$0xf]
        %v359 = vld [vmem:[#allocation5 + $0x10] sm:$0xf]
        %v360 = vld [vmem:[#allocation5 + $0x14] sm:$0xf]
        %v361 = vld [vmem:[#allocation5 + $0x18] sm:$0xf]
        %v362 = vld [vmem:[#allocation5 + $0x1c] sm:$0xf]
        %v363 = vld [vmem:[#allocation5 + $0x20] sm:$0xf]
        %v364 = vld [vmem:[#allocation5 + $0x24] sm:$0xf]
        %v365 = vld [vmem:[#allocation5 + $0x28] sm:$0xf]
        %v366 = vld [vmem:[#allocation5 + $0x2c] sm:$0xf]
        %v367 = vld [vmem:[#allocation5 + $0x30] sm:$0xf]
        %v368 = vld [vmem:[#allocation5 + $0x34] sm:$0xf]
        %v369 = vld [vmem:[#allocation5 + $0x38] sm:$0xf]
        %v370 = vld [vmem:[#allocation5 + $0x3c] sm:$0xf]
        %v371 = vld [vmem:[#allocation5 + $0x40] sm:$0xf]
        %v372 = vld [vmem:[#allocation5 + $0x44] sm:$0xf]
        %v373 = vld [vmem:[#allocation5 + $0x48] sm:$0xf]
        %v374 = vld [vmem:[#allocation5 + $0x4c] sm:$0xf]
        %v375 = vld [vmem:[#allocation5 + $0x50] sm:$0xf]
        %v376 = vld [vmem:[#allocation5 + $0x54] sm:$0xf]
        %v377 = vld [vmem:[#allocation5 + $0x58] sm:$0xf]
        %v378 = vld [vmem:[#allocation5 + $0x5c] sm:$0xf]
        %v379 = vld [vmem:[#allocation5 + $0x60] sm:$0xf]
        %v380 = vld [vmem:[#allocation5 + $0x64] sm:$0xf]
        %v381 = vld [vmem:[#allocation5 + $0x68] sm:$0xf]
        %v382 = vld [vmem:[#allocation5 + $0x6c] sm:$0xf]
        %v383 = vld [vmem:[#allocation5 + $0x70] sm:$0xf]
        %v384 = vld [vmem:[#allocation5 + $0x74] sm:$0xf]
        %v385 = vld [vmem:[#allocation5 + $0x78] sm:$0xf]
        %v386 = vld [vmem:[#allocation5 + $0x7c] sm:$0xf]
        %v387 = vld [vmem:[#allocation5 + $0x80] sm:$0xf]
        %v388 = vld [vmem:[#allocation5 + $0x84] sm:$0xf]
        %v389 = vld [vmem:[#allocation5 + $0x88] sm:$0xf]
        %v390 = vld [vmem:[#allocation5 + $0x8c] sm:$0xf]
        %v391 = vld [vmem:[#allocation5 + $0x90] sm:$0xf]
        %v392 = vld [vmem:[#allocation5 + $0x94] sm:$0xf]
        %v393 = vld [vmem:[#allocation5 + $0x98] sm:$0xf]
        %v394 = vld [vmem:[#allocation5 + $0x9c] sm:$0xf]
        %v395 = vld [vmem:[#allocation5 + $0xa0] sm:$0xf]
        %v396 = vld [vmem:[#allocation5 + $0xa4] sm:$0xf]
        %v397 = vld [vmem:[#allocation5 + $0xa8] sm:$0xf]
        %v398 = vld [vmem:[#allocation5 + $0xac] sm:$0xf]
        %v399 = vld [vmem:[#allocation5 + $0xb0] sm:$0xf]
        %v400 = vld [vmem:[#allocation5 + $0xb4] sm:$0xf]
        %v401 = vld [vmem:[#allocation5 + $0xb8] sm:$0xf]
        %v402 = vld [vmem:[#allocation5 + $0xbc] sm:$0xf]
        %v403 = vld [vmem:[#allocation5 + $0xc0] sm:$0xf]
        %v404 = vld [vmem:[#allocation5 + $0xc4] sm:$0xf]
        %v405 = vld [vmem:[#allocation5 + $0xc8] sm:$0xf]
        %v406 = vld [vmem:[#allocation5 + $0xcc] sm:$0xf]
        %v407 = vld [vmem:[#allocation5 + $0xd0] sm:$0xf]
        %v408 = vld [vmem:[#allocation5 + $0xd4] sm:$0xf]
        %v409 = vld [vmem:[#allocation5 + $0xd8] sm:$0xf]
        %v410 = vld [vmem:[#allocation5 + $0xdc] sm:$0xf]
        %v411 = vld [vmem:[#allocation5 + $0xe0] sm:$0xf]
        %v412 = vld [vmem:[#allocation5 + $0xe4] sm:$0xf]
        %v413 = vld [vmem:[#allocation5 + $0xe8] sm:$0xf]
        %v414 = vld [vmem:[#allocation5 + $0xec] sm:$0xf]
        %v415 = vld [vmem:[#allocation5 + $0xf0] sm:$0xf]
        %v416 = vld [vmem:[#allocation5 + $0xf4] sm:$0xf]
        %v417 = vld [vmem:[#allocation5 + $0xf8] sm:$0xf]
        %v418 = vld [vmem:[#allocation5 + $0xfc] sm:$0xf]
        %v419 = vld [vmem:[#allocation5 + $0x100] sm:$0xf]
        %v420 = vld [vmem:[#allocation5 + $0x104] sm:$0xf]
        %v421 = vld [vmem:[#allocation5 + $0x108] sm:$0xf]
        %v422 = vld [vmem:[#allocation5 + $0x10c] sm:$0xf]
        %v423 = vld [vmem:[#allocation5 + $0x110] sm:$0xf]
        %v424 = vld [vmem:[#allocation5 + $0x114] sm:$0xf]
        %v425 = vld [vmem:[#allocation5 + $0x118] sm:$0xf]
        %v426 = vld [vmem:[#allocation5 + $0x11c] sm:$0xf]
        %v427 = vld [vmem:[#allocation5 + $0x120] sm:$0xf]
        %v428 = vld [vmem:[#allocation5 + $0x124] sm:$0xf]
        %v429 = vld [vmem:[#allocation5 + $0x128] sm:$0xf]
        %v430 = vld [vmem:[#allocation5 + $0x12c] sm:$0xf]
        %v431 = vld [vmem:[#allocation5 + $0x130] sm:$0xf]
        %v432 = vld [vmem:[#allocation5 + $0x134] sm:$0xf]
        %v433 = vld [vmem:[#allocation5 + $0x138] sm:$0xf]
        %v434 = vld [vmem:[#allocation5 + $0x13c] sm:$0xf]
        %v435 = vld [vmem:[#allocation5 + $0x140] sm:$0xf]
        %v436 = vld [vmem:[#allocation5 + $0x144] sm:$0xf]
        %v437 = vld [vmem:[#allocation5 + $0x148] sm:$0xf]
        %v438 = vld [vmem:[#allocation5 + $0x14c] sm:$0xf]
        %v439 = vld [vmem:[#allocation5 + $0x150] sm:$0xf]
        %v440 = vld [vmem:[#allocation5 + $0x154] sm:$0xf]
        %v441 = vld [vmem:[#allocation5 + $0x158] sm:$0xf]
        %v442 = vld [vmem:[#allocation5 + $0x15c] sm:$0xf]
        %v443 = vld [vmem:[#allocation5 + $0x160] sm:$0xf]
        %v444 = vld [vmem:[#allocation5 + $0x164] sm:$0xf]
        %v445 = vld [vmem:[#allocation5 + $0x168] sm:$0xf]
        %v446 = vld [vmem:[#allocation5 + $0x16c] sm:$0xf]
        %v447 = vld [vmem:[#allocation5 + $0x170] sm:$0xf]
        %v448 = vld [vmem:[#allocation5 + $0x174] sm:$0xf]
        %v449 = vld [vmem:[#allocation5 + $0x178] sm:$0xf]
        %v450 = vld [vmem:[#allocation5 + $0x17c] sm:$0xf]
        %v451 = vld [vmem:[#allocation5 + $0x180] sm:$0xf]
        %v452 = vld [vmem:[#allocation5 + $0x184] sm:$0xf]
        %v453 = vld [vmem:[#allocation5 + $0x188] sm:$0xf]
        %v454 = vld [vmem:[#allocation5 + $0x18c] sm:$0xf]
        %v455 = vld [vmem:[#allocation5 + $0x190] sm:$0xf]
        %v456 = vld [vmem:[#allocation5 + $0x194] sm:$0xf]
        %v457 = vld [vmem:[#allocation5 + $0x198] sm:$0xf]
        %v458 = vld [vmem:[#allocation5 + $0x19c] sm:$0xf]
        %v459 = vld [vmem:[#allocation5 + $0x1a0] sm:$0xf]
        %v460 = vld [vmem:[#allocation5 + $0x1a4] sm:$0xf]
        %v461 = vld [vmem:[#allocation5 + $0x1a8] sm:$0xf]
        %v462 = vld [vmem:[#allocation5 + $0x1ac] sm:$0xf]
        %v463 = vld [vmem:[#allocation5 + $0x1b0] sm:$0xf]
        %v464 = vld [vmem:[#allocation5 + $0x1b4] sm:$0xf]
        %v465 = vld [vmem:[#allocation5 + $0x1b8] sm:$0xf]
        %v466 = vld [vmem:[#allocation5 + $0x1bc] sm:$0xf]
        %v467 = vld [vmem:[#allocation5 + $0x1c0] sm:$0xf]
        %v468 = vld [vmem:[#allocation5 + $0x1c4] sm:$0xf]
        %v469 = vld [vmem:[#allocation5 + $0x1c8] sm:$0xf]
        %v470 = vld [vmem:[#allocation5 + $0x1cc] sm:$0xf]
        %v471 = vld [vmem:[#allocation5 + $0x1d0] sm:$0xf]
        %v472 = vld [vmem:[#allocation5 + $0x1d4] sm:$0xf]
        %v473 = vld [vmem:[#allocation5 + $0x1d8] sm:$0xf]
        %v474 = vld [vmem:[#allocation5 + $0x1dc] sm:$0xf]
        %v475 = vld [vmem:[#allocation5 + $0x1e0] sm:$0xf]
        %v476 = vld [vmem:[#allocation5 + $0x1e4] sm:$0xf]
        %v477 = vld [vmem:[#allocation5 + $0x1e8] sm:$0xf]
        %v478 = vld [vmem:[#allocation5 + $0x1ec] sm:$0xf]
        %v479 = vld [vmem:[#allocation5 + $0x1f0] sm:$0xf]
        %v480 = vld [vmem:[#allocation5 + $0x1f4] sm:$0xf]
        %v481 = vld [vmem:[#allocation5 + $0x1f8] sm:$0xf]
        %v482 = vld [vmem:[#allocation5 + $0x1fc] sm:$0xf]
        %v483 = vld [vmem:[#allocation5 + $0x200] sm:$0xf]
        %v484 = vld [vmem:[#allocation5 + $0x204] sm:$0xf]
        %v485 = vld [vmem:[#allocation5 + $0x208] sm:$0xf]
        %v486 = vld [vmem:[#allocation5 + $0x20c] sm:$0xf]
        %v487 = vld [vmem:[#allocation5 + $0x210] sm:$0xf]
        %v488 = vld [vmem:[#allocation5 + $0x214] sm:$0xf]
        %v489 = vld [vmem:[#allocation5 + $0x218] sm:$0xf]
        %v490 = vld [vmem:[#allocation5 + $0x21c] sm:$0xf]
        %v491 = vld [vmem:[#allocation5 + $0x220] sm:$0xf]
        %v492 = vld [vmem:[#allocation5 + $0x224] sm:$0xf]
        %v493 = vld [vmem:[#allocation5 + $0x228] sm:$0xf]
        %v494 = vld [vmem:[#allocation5 + $0x22c] sm:$0xf]
        %v495 = vld [vmem:[#allocation5 + $0x230] sm:$0xf]
        %v496 = vld [vmem:[#allocation5 + $0x234] sm:$0xf]
        %v497 = vld [vmem:[#allocation5 + $0x238] sm:$0xf]
        %v498 = vld [vmem:[#allocation5 + $0x23c] sm:$0xf]
        %v499 = vld [vmem:[#allocation5 + $0x240] sm:$0xf]
        %v500 = vld [vmem:[#allocation5 + $0x244] sm:$0xf]
        %v501 = vld [vmem:[#allocation5 + $0x248] sm:$0xf]
        %v502 = vld [vmem:[#allocation5 + $0x24c] sm:$0xf]
        %v503 = vld [vmem:[#allocation5 + $0x250] sm:$0xf]
        %v504 = vld [vmem:[#allocation5 + $0x254] sm:$0xf]
        %v505 = vld [vmem:[#allocation5 + $0x258] sm:$0xf]
        %v506 = vld [vmem:[#allocation5 + $0x25c] sm:$0xf]
        %v507 = vld [vmem:[#allocation5 + $0x260] sm:$0xf]
        %v508 = vld [vmem:[#allocation5 + $0x264] sm:$0xf]
        %v509 = vld [vmem:[#allocation5 + $0x268] sm:$0xf]
        %v510 = vld [vmem:[#allocation5 + $0x26c] sm:$0xf]
        %v511 = vld [vmem:[#allocation5 + $0x270] sm:$0xf]
        %v512 = vld [vmem:[#allocation5 + $0x274] sm:$0xf]
        %v513 = vld [vmem:[#allocation5 + $0x278] sm:$0xf]
        %v514 = vld [vmem:[#allocation5 + $0x27c] sm:$0xf]
        %v515 = vld [vmem:[#allocation5 + $0x280] sm:$0xf]
        %v516 = vld [vmem:[#allocation5 + $0x284] sm:$0xf]
        %v517 = vld [vmem:[#allocation5 + $0x288] sm:$0xf]
        %v518 = vld [vmem:[#allocation5 + $0x28c] sm:$0xf]
        %v519 = vld [vmem:[#allocation5 + $0x290] sm:$0xf]
        %v520 = vld [vmem:[#allocation5 + $0x294] sm:$0xf]
        %v521 = vld [vmem:[#allocation5 + $0x298] sm:$0xf]
        %v522 = vld [vmem:[#allocation5 + $0x29c] sm:$0xf]
        %v523 = vld [vmem:[#allocation5 + $0x2a0] sm:$0xf]
        %v524 = vld [vmem:[#allocation5 + $0x2a4] sm:$0xf]
        %v525 = vld [vmem:[#allocation5 + $0x2a8] sm:$0xf]
        %v526 = vld [vmem:[#allocation5 + $0x2ac] sm:$0xf]
        %v527 = vld [vmem:[#allocation5 + $0x2b0] sm:$0xf]
        %v528 = vld [vmem:[#allocation5 + $0x2b4] sm:$0xf]
        %v529 = vld [vmem:[#allocation5 + $0x2b8] sm:$0xf]
        %v530 = vld [vmem:[#allocation5 + $0x2bc] sm:$0xf]
        %v531 = vld [vmem:[#allocation5 + $0x2c0] sm:$0xf]
        %v532 = vld [vmem:[#allocation5 + $0x2c4] sm:$0xf]
        %v533 = vld [vmem:[#allocation5 + $0x2c8] sm:$0xf]
        %v534 = vld [vmem:[#allocation5 + $0x2cc] sm:$0xf]
        %v535 = vld [vmem:[#allocation5 + $0x2d0] sm:$0xf]
        %v536 = vld [vmem:[#allocation5 + $0x2d4] sm:$0xf]
        %v537 = vld [vmem:[#allocation5 + $0x2d8] sm:$0xf]
        %v538 = vld [vmem:[#allocation5 + $0x2dc] sm:$0xf]
        %v539 = vld [vmem:[#allocation5 + $0x2e0] sm:$0xf]
        %v540 = vld [vmem:[#allocation5 + $0x2e4] sm:$0xf]
        %v541 = vld [vmem:[#allocation5 + $0x2e8] sm:$0xf]
        %v542 = vld [vmem:[#allocation5 + $0x2ec] sm:$0xf]
        %v543 = vld [vmem:[#allocation5 + $0x2f0] sm:$0xf]
        %v544 = vld [vmem:[#allocation5 + $0x2f4] sm:$0xf]
        %v545 = vld [vmem:[#allocation5 + $0x2f8] sm:$0xf]
        %v546 = vld [vmem:[#allocation5 + $0x2fc] sm:$0xf]
        %v547 = vld [vmem:[#allocation5 + $0x300] sm:$0xf]
        %v548 = vld [vmem:[#allocation5 + $0x304] sm:$0xf]
        %v549 = vld [vmem:[#allocation5 + $0x308] sm:$0xf]
        %v550 = vld [vmem:[#allocation5 + $0x30c] sm:$0xf]
        %v551 = vld [vmem:[#allocation5 + $0x310] sm:$0xf]
        %v552 = vld [vmem:[#allocation5 + $0x314] sm:$0xf]
        %v553 = vld [vmem:[#allocation5 + $0x318] sm:$0xf]
        %v554 = vld [vmem:[#allocation5 + $0x31c] sm:$0xf]
        %v555 = vld [vmem:[#allocation5 + $0x320] sm:$0xf]
        %v556 = vld [vmem:[#allocation5 + $0x324] sm:$0xf]
        %v557 = vld [vmem:[#allocation5 + $0x328] sm:$0xf]
        %v558 = vld [vmem:[#allocation5 + $0x32c] sm:$0xf]
        %v559 = vld [vmem:[#allocation5 + $0x330] sm:$0xf]
        %v560 = vld [vmem:[#allocation5 + $0x334] sm:$0xf]
        %v561 = vld [vmem:[#allocation5 + $0x338] sm:$0xf]
        %v562 = vld [vmem:[#allocation5 + $0x33c] sm:$0xf]
        %v563 = vld [vmem:[#allocation5 + $0x340] sm:$0xf]
        %v564 = vld [vmem:[#allocation5 + $0x344] sm:$0xf]
        %v565 = vld [vmem:[#allocation5 + $0x348] sm:$0xf]
        %v566 = vld [vmem:[#allocation5 + $0x34c] sm:$0xf]
        %v567 = vld [vmem:[#allocation5 + $0x350] sm:$0xf]
        %v568 = vld [vmem:[#allocation5 + $0x354] sm:$0xf]
        %v569 = vld [vmem:[#allocation5 + $0x358] sm:$0xf]
        %v570 = vld [vmem:[#allocation5 + $0x35c] sm:$0xf]
        %v571 = vld [vmem:[#allocation5 + $0x360] sm:$0xf]
        %v572 = vld [vmem:[#allocation5 + $0x364] sm:$0xf]
        %v573 = vld [vmem:[#allocation5 + $0x368] sm:$0xf]
        %v574 = vld [vmem:[#allocation5 + $0x36c] sm:$0xf]
        %v575 = vld [vmem:[#allocation5 + $0x370] sm:$0xf]
        %v576 = vld [vmem:[#allocation5 + $0x374] sm:$0xf]
        %v577 = vld [vmem:[#allocation5 + $0x378] sm:$0xf]
        %v578 = vld [vmem:[#allocation5 + $0x37c] sm:$0xf]
        %v579 = vld [vmem:[#allocation5 + $0x380] sm:$0xf]
        %v580 = vld [vmem:[#allocation5 + $0x384] sm:$0xf]
        %v581 = vld [vmem:[#allocation5 + $0x388] sm:$0xf]
        %v582 = vld [vmem:[#allocation5 + $0x38c] sm:$0xf]
        %v583 = vld [vmem:[#allocation5 + $0x390] sm:$0xf]
        %v584 = vld [vmem:[#allocation5 + $0x394] sm:$0xf]
        %v585 = vld [vmem:[#allocation5 + $0x398] sm:$0xf]
        %v586 = vld [vmem:[#allocation5 + $0x39c] sm:$0xf]
        %v587 = vld [vmem:[#allocation5 + $0x3a0] sm:$0xf]
        %v588 = vld [vmem:[#allocation5 + $0x3a4] sm:$0xf]
        %v589 = vld [vmem:[#allocation5 + $0x3a8] sm:$0xf]
        %v590 = vld [vmem:[#allocation5 + $0x3ac] sm:$0xf]
        %v591 = vld [vmem:[#allocation5 + $0x3b0] sm:$0xf]
        %v592 = vld [vmem:[#allocation5 + $0x3b4] sm:$0xf]
        %v593 = vld [vmem:[#allocation5 + $0x3b8] sm:$0xf]
        %v594 = vld [vmem:[#allocation5 + $0x3bc] sm:$0xf]
        %v595 = vld [vmem:[#allocation5 + $0x3c0] sm:$0xf]
        %v596 = vld [vmem:[#allocation5 + $0x3c4] sm:$0xf]
        %v597 = vld [vmem:[#allocation5 + $0x3c8] sm:$0xf]
        %v598 = vld [vmem:[#allocation5 + $0x3cc] sm:$0xf]
        %v599 = vld [vmem:[#allocation5 + $0x3d0] sm:$0xf]
        %v600 = vld [vmem:[#allocation5 + $0x3d4] sm:$0xf]
        %v601 = vld [vmem:[#allocation5 + $0x3d8] sm:$0xf]
        %v602 = vld [vmem:[#allocation5 + $0x3dc] sm:$0xf]
        %v603 = vld [vmem:[#allocation5 + $0x3e0] sm:$0xf]
        %v604 = vld [vmem:[#allocation5 + $0x3e4] sm:$0xf]
        %v605 = vld [vmem:[#allocation5 + $0x3e8] sm:$0xf]
        %v606 = vld [vmem:[#allocation5 + $0x3ec] sm:$0xf]
        %v607 = vld [vmem:[#allocation5 + $0x3f0] sm:$0xf]
        %v608 = vld [vmem:[#allocation5 + $0x3f4] sm:$0xf]
        %v609 = vld [vmem:[#allocation5 + $0x3f8] sm:$0xf]
        %v610 = vld [vmem:[#allocation5 + $0x3fc] sm:$0xf]
        %v611 = vld [vmem:[#allocation5 + $0x400] sm:$0xf]
        %v612 = vld [vmem:[#allocation5 + $0x404] sm:$0xf]
        %v613 = vld [vmem:[#allocation5 + $0x408] sm:$0xf]
        %v614 = vld [vmem:[#allocation5 + $0x40c] sm:$0xf]
        %v615 = vld [vmem:[#allocation5 + $0x410] sm:$0xf]
        %v616 = vld [vmem:[#allocation5 + $0x414] sm:$0xf]
        %v617 = vld [vmem:[#allocation5 + $0x418] sm:$0xf]
        %v618 = vld [vmem:[#allocation5 + $0x41c] sm:$0xf]
        %v619 = vld [vmem:[#allocation5 + $0x420] sm:$0xf]
        %v620 = vld [vmem:[#allocation5 + $0x424] sm:$0xf]
        %v621 = vld [vmem:[#allocation5 + $0x428] sm:$0xf]
        %v622 = vld [vmem:[#allocation5 + $0x42c] sm:$0xf]
        %v623 = vld [vmem:[#allocation5 + $0x430] sm:$0xf]
        %v624 = vld [vmem:[#allocation5 + $0x434] sm:$0xf]
        %v625 = vld [vmem:[#allocation5 + $0x438] sm:$0xf]
        %v626 = vld [vmem:[#allocation5 + $0x43c] sm:$0xf]
        %v627 = vld [vmem:[#allocation5 + $0x440] sm:$0xf]
        %v628 = vld [vmem:[#allocation5 + $0x444] sm:$0xf]
        %v629 = vld [vmem:[#allocation5 + $0x448] sm:$0xf]
        %v630 = vld [vmem:[#allocation5 + $0x44c] sm:$0xf]
        %v631 = vld [vmem:[#allocation5 + $0x450] sm:$0xf]
        %v632 = vld [vmem:[#allocation5 + $0x454] sm:$0xf]
        %v633 = vld [vmem:[#allocation5 + $0x458] sm:$0xf]
        %v634 = vld [vmem:[#allocation5 + $0x45c] sm:$0xf]
        %v635 = vld [vmem:[#allocation5 + $0x460] sm:$0xf]
        %v636 = vld [vmem:[#allocation5 + $0x464] sm:$0xf]
        %v637 = vld [vmem:[#allocation5 + $0x468] sm:$0xf]
        %v638 = vld [vmem:[#allocation5 + $0x46c] sm:$0xf]
        %v639 = vld [vmem:[#allocation5 + $0x470] sm:$0xf]
        %v640 = vld [vmem:[#allocation5 + $0x474] sm:$0xf]
        %v641 = vld [vmem:[#allocation5 + $0x478] sm:$0xf]
        %v642 = vld [vmem:[#allocation5 + $0x47c] sm:$0xf]
        %v643 = vld [vmem:[#allocation5 + $0x480] sm:$0xf]
        %v644 = vld [vmem:[#allocation5 + $0x484] sm:$0xf]
        %v645 = vld [vmem:[#allocation5 + $0x488] sm:$0xf]
        %v646 = vld [vmem:[#allocation5 + $0x48c] sm:$0xf]
        %v647 = vld [vmem:[#allocation5 + $0x490] sm:$0xf]
        %v648 = vld [vmem:[#allocation5 + $0x494] sm:$0xf]
        %v649 = vld [vmem:[#allocation5 + $0x498] sm:$0xf]
        %v650 = vld [vmem:[#allocation5 + $0x49c] sm:$0xf]
        %v651 = vld [vmem:[#allocation5 + $0x4a0] sm:$0xf]
        %v652 = vld [vmem:[#allocation5 + $0x4a4] sm:$0xf]
        %v653 = vld [vmem:[#allocation5 + $0x4a8] sm:$0xf]
        %v654 = vld [vmem:[#allocation5 + $0x4ac] sm:$0xf]
        %v655 = vld [vmem:[#allocation5 + $0x4b0] sm:$0xf]
        %v656 = vld [vmem:[#allocation5 + $0x4b4] sm:$0xf]
        %v657 = vld [vmem:[#allocation5 + $0x4b8] sm:$0xf]
        %v658 = vld [vmem:[#allocation5 + $0x4bc] sm:$0xf]
        %v659 = vld [vmem:[#allocation5 + $0x4c0] sm:$0xf]
        %v660 = vld [vmem:[#allocation5 + $0x4c4] sm:$0xf]
        %v661 = vld [vmem:[#allocation5 + $0x4c8] sm:$0xf]
        %v662 = vld [vmem:[#allocation5 + $0x4cc] sm:$0xf]
        %v663 = vld [vmem:[#allocation5 + $0x4d0] sm:$0xf]
        %v664 = vld [vmem:[#allocation5 + $0x4d4] sm:$0xf]
        %v665 = vld [vmem:[#allocation5 + $0x4d8] sm:$0xf]
        %v666 = vld [vmem:[#allocation5 + $0x4dc] sm:$0xf]
        %v667 = vld [vmem:[#allocation5 + $0x4e0] sm:$0xf]
        %v668 = vld [vmem:[#allocation5 + $0x4e4] sm:$0xf]
        %v669 = vld [vmem:[#allocation5 + $0x4e8] sm:$0xf]
        %v670 = vld [vmem:[#allocation5 + $0x4ec] sm:$0xf]
        %v671 = vld [vmem:[#allocation5 + $0x4f0] sm:$0xf]
        %v672 = vld [vmem:[#allocation5 + $0x4f4] sm:$0xf]
        %v673 = vld [vmem:[#allocation5 + $0x4f8] sm:$0xf]
        %v674 = vld [vmem:[#allocation5 + $0x4fc] sm:$0xf]
        %v675 = vld [vmem:[#allocation5 + $0x500] sm:$0xf]
        %v676 = vld [vmem:[#allocation5 + $0x504] sm:$0xf]
        %v677 = vld [vmem:[#allocation5 + $0x508] sm:$0xf]
        %v678 = vld [vmem:[#allocation5 + $0x50c] sm:$0xf]
        %v679 = vld [vmem:[#allocation5 + $0x510] sm:$0xf]
        %v680 = vld [vmem:[#allocation5 + $0x514] sm:$0xf]
        %v681 = vld [vmem:[#allocation5 + $0x518] sm:$0xf]
        %v682 = vld [vmem:[#allocation5 + $0x51c] sm:$0xf]
        %v683 = vld [vmem:[#allocation5 + $0x520] sm:$0xf]
        %v684 = vld [vmem:[#allocation5 + $0x524] sm:$0xf]
        %v685 = vld [vmem:[#allocation5 + $0x528] sm:$0xf]
        %v686 = vld [vmem:[#allocation5 + $0x52c] sm:$0xf]
        %v687 = vld [vmem:[#allocation5 + $0x530] sm:$0xf]
        %v688 = vld [vmem:[#allocation5 + $0x534] sm:$0xf]
        %v689 = vld [vmem:[#allocation5 + $0x538] sm:$0xf]
        %v690 = vld [vmem:[#allocation5 + $0x53c] sm:$0xf]
        %v691 = vld [vmem:[#allocation5 + $0x540] sm:$0xf]
        %v692 = vld [vmem:[#allocation5 + $0x544] sm:$0xf]
        %v693 = vld [vmem:[#allocation5 + $0x548] sm:$0xf]
        %v694 = vld [vmem:[#allocation5 + $0x54c] sm:$0xf]
        %v695 = vld [vmem:[#allocation5 + $0x550] sm:$0xf]
        %v696 = vld [vmem:[#allocation5 + $0x554] sm:$0xf]
        %v697 = vld [vmem:[#allocation5 + $0x558] sm:$0xf]
        %v698 = vld [vmem:[#allocation5 + $0x55c] sm:$0xf]
        %v699 = vld [vmem:[#allocation5 + $0x560] sm:$0xf]
        %v700 = vld [vmem:[#allocation5 + $0x564] sm:$0xf]
        %v701 = vld [vmem:[#allocation5 + $0x568] sm:$0xf]
        %v702 = vld [vmem:[#allocation5 + $0x56c] sm:$0xf]
        %v703 = vld [vmem:[#allocation5 + $0x570] sm:$0xf]
        %v704 = vld [vmem:[#allocation5 + $0x574] sm:$0xf]
        %v705 = vld [vmem:[#allocation5 + $0x578] sm:$0xf]
        %v706 = vld [vmem:[#allocation5 + $0x57c] sm:$0xf]
        %v707 = vld [vmem:[#allocation5 + $0x580] sm:$0xf]
        %v708 = vld [vmem:[#allocation5 + $0x584] sm:$0xf]
        %v709 = vld [vmem:[#allocation5 + $0x588] sm:$0xf]
        %v710 = vld [vmem:[#allocation5 + $0x58c] sm:$0xf]
        %v711 = vld [vmem:[#allocation5 + $0x590] sm:$0xf]
        %v712 = vld [vmem:[#allocation5 + $0x594] sm:$0xf]
        %v713 = vld [vmem:[#allocation5 + $0x598] sm:$0xf]
        %v714 = vld [vmem:[#allocation5 + $0x59c] sm:$0xf]
        %v715 = vld [vmem:[#allocation5 + $0x5a0] sm:$0xf]
        %v716 = vld [vmem:[#allocation5 + $0x5a4] sm:$0xf]
        %v717 = vld [vmem:[#allocation5 + $0x5a8] sm:$0xf]
        %v718 = vld [vmem:[#allocation5 + $0x5ac] sm:$0xf]
        %v719 = vld [vmem:[#allocation5 + $0x5b0] sm:$0xf]
        %v720 = vld [vmem:[#allocation5 + $0x5b4] sm:$0xf]
        %v721 = vld [vmem:[#allocation5 + $0x5b8] sm:$0xf]
        %v722 = vld [vmem:[#allocation5 + $0x5bc] sm:$0xf]
        %v723 = vld [vmem:[#allocation5 + $0x5c0] sm:$0xf]
        %v724 = vld [vmem:[#allocation5 + $0x5c4] sm:$0xf]
        %v725 = vld [vmem:[#allocation5 + $0x5c8] sm:$0xf]
        %v726 = vld [vmem:[#allocation5 + $0x5cc] sm:$0xf]
        %v727 = vld [vmem:[#allocation5 + $0x5d0] sm:$0xf]
        %v728 = vld [vmem:[#allocation5 + $0x5d4] sm:$0xf]
        %v729 = vld [vmem:[#allocation5 + $0x5d8] sm:$0xf]
        %v730 = vld [vmem:[#allocation5 + $0x5dc] sm:$0xf]
        %v731 = vld [vmem:[#allocation5 + $0x5e0] sm:$0xf]
        %v732 = vld [vmem:[#allocation5 + $0x5e4] sm:$0xf]
        %v733 = vld [vmem:[#allocation5 + $0x5e8] sm:$0xf]
        %v734 = vld [vmem:[#allocation5 + $0x5ec] sm:$0xf]
        %v735 = vld [vmem:[#allocation5 + $0x5f0] sm:$0xf]
        %v736 = vld [vmem:[#allocation5 + $0x5f4] sm:$0xf]
        %v737 = vld [vmem:[#allocation5 + $0x5f8] sm:$0xf]
        %v738 = vld [vmem:[#allocation5 + $0x5fc] sm:$0xf]
        %v739 = vld [vmem:[#allocation7] sm:$0xff]
        %v740 = vld [vmem:[#allocation7 + $0x8] sm:$0xff]
        %v741 = vld [vmem:[#allocation7 + $0x10] sm:$0xff]
        %v742 = vld [vmem:[#allocation7 + $0x18] sm:$0xff]
        %v743 = vld [vmem:[#allocation7 + $0x20] sm:$0xff]
        %v744 = vld [vmem:[#allocation7 + $0x28] sm:$0xff]
        %v745 = vld [vmem:[#allocation7 + $0x30] sm:$0xff]
        %v746 = vld [vmem:[#allocation7 + $0x38] sm:$0xff]
        %v843 = vunpack.c.l.b16 %v259
        %v844 = vunpack.c.h.b16 %v259
        %v845 = vunpack.c.l.b16 %v260
        %v846 = vunpack.c.h.b16 %v260
        %v847 = vunpack.c.l.b16 %v261
        %v848 = vunpack.c.h.b16 %v261
        %v849 = vunpack.c.l.b16 %v262
        %v850 = vunpack.c.h.b16 %v262
        %v851 = vunpack.c.l.b16 %v263
        %v852 = vunpack.c.h.b16 %v263
        %v853 = vunpack.c.l.b16 %v264
        %v854 = vunpack.c.h.b16 %v264
        %v855 = vunpack.c.l.b16 %v265
        %v856 = vunpack.c.h.b16 %v265
        %v857 = vunpack.c.l.b16 %v266
        %v858 = vunpack.c.h.b16 %v266
        %v859 = vunpack.c.l.b16 %v267
        %v860 = vunpack.c.h.b16 %v267
        %v861 = vunpack.c.l.b16 %v268
        %v862 = vunpack.c.h.b16 %v268
        %v863 = vunpack.c.l.b16 %v269
        %v864 = vunpack.c.h.b16 %v269
        %v865 = vunpack.c.l.b16 %v270
        %v866 = vunpack.c.h.b16 %v270
        %v867 = vunpack.c.l.b16 %v271
        %v868 = vunpack.c.h.b16 %v271
        %v869 = vunpack.c.l.b16 %v272
        %v870 = vunpack.c.h.b16 %v272
        %v871 = vunpack.c.l.b16 %v273
        %v872 = vunpack.c.h.b16 %v273
        %v873 = vunpack.c.l.b16 %v274
        %v874 = vunpack.c.h.b16 %v274
        %v875 = vunpack.c.l.b16 %v275
        %v876 = vunpack.c.h.b16 %v275
        %v877 = vunpack.c.l.b16 %v276
        %v878 = vunpack.c.h.b16 %v276
        %v879 = vunpack.c.l.b16 %v277
        %v880 = vunpack.c.h.b16 %v277
        %v881 = vunpack.c.l.b16 %v278
        %v882 = vunpack.c.h.b16 %v278
        %v883 = vunpack.c.l.b16 %v279
        %v884 = vunpack.c.h.b16 %v279
        %v885 = vunpack.c.l.b16 %v280
        %v886 = vunpack.c.h.b16 %v280
        %v887 = vunpack.c.l.b16 %v281
        %v888 = vunpack.c.h.b16 %v281
        %v889 = vunpack.c.l.b16 %v282
        %v890 = vunpack.c.h.b16 %v282
        %v891 = vunpack.c.l.b16 %v283
        %v892 = vunpack.c.h.b16 %v283
        %v893 = vunpack.c.l.b16 %v284
        %v894 = vunpack.c.h.b16 %v284
        %v895 = vunpack.c.l.b16 %v285
        %v896 = vunpack.c.h.b16 %v285
        %v897 = vunpack.c.l.b16 %v286
        %v898 = vunpack.c.h.b16 %v286
        %v899 = vunpack.c.l.b16 %v287
        %v900 = vunpack.c.h.b16 %v287
        %v901 = vunpack.c.l.b16 %v288
        %v902 = vunpack.c.h.b16 %v288
        %v903 = vunpack.c.l.b16 %v289
        %v904 = vunpack.c.h.b16 %v289
        %v905 = vunpack.c.l.b16 %v290
        %v906 = vunpack.c.h.b16 %v290
        %v907 = vunpack.c.l.b16 %v291
        %v908 = vunpack.c.h.b16 %v291
        %v909 = vunpack.c.l.b16 %v292
        %v910 = vunpack.c.h.b16 %v292
        %v911 = vunpack.c.l.b16 %v293
        %v912 = vunpack.c.h.b16 %v293
        %v913 = vunpack.c.l.b16 %v294
        %v914 = vunpack.c.h.b16 %v294
        %v915 = vunpack.c.l.b16 %v295
        %v916 = vunpack.c.h.b16 %v295
        %v917 = vunpack.c.l.b16 %v296
        %v918 = vunpack.c.h.b16 %v296
        %v919 = vunpack.c.l.b16 %v297
        %v920 = vunpack.c.h.b16 %v297
        %v921 = vunpack.c.l.b16 %v298
        %v922 = vunpack.c.h.b16 %v298
        %v923 = vunpack.c.l.b16 %v299
        %v924 = vunpack.c.h.b16 %v299
        %v925 = vunpack.c.l.b16 %v300
        %v926 = vunpack.c.h.b16 %v300
        %v927 = vunpack.c.l.b16 %v301
        %v928 = vunpack.c.h.b16 %v301
        %v929 = vunpack.c.l.b16 %v302
        %v930 = vunpack.c.h.b16 %v302
        %v931 = vunpack.c.l.b16 %v303
        %v932 = vunpack.c.h.b16 %v303
        %v933 = vunpack.c.l.b16 %v304
        %v934 = vunpack.c.h.b16 %v304
        %v935 = vunpack.c.l.b16 %v305
        %v936 = vunpack.c.h.b16 %v305
        %v937 = vunpack.c.l.b16 %v306
        %v938 = vunpack.c.h.b16 %v306
        %v939 = vunpack.c.l.b16 %v307
        %v940 = vunpack.c.h.b16 %v307
        %v941 = vunpack.c.l.b16 %v308
        %v942 = vunpack.c.h.b16 %v308
        %v943 = vunpack.c.l.b16 %v309
        %v944 = vunpack.c.h.b16 %v309
        %v945 = vunpack.c.l.b16 %v310
        %v946 = vunpack.c.h.b16 %v310
        %v947 = vunpack.c.l.b16 %v311
        %v948 = vunpack.c.h.b16 %v311
        %v949 = vunpack.c.l.b16 %v312
        %v950 = vunpack.c.h.b16 %v312
        %v951 = vunpack.c.l.b16 %v313
        %v952 = vunpack.c.h.b16 %v313
        %v953 = vunpack.c.l.b16 %v314
        %v954 = vunpack.c.h.b16 %v314
        %v955 = vunpack.c.l.b16 %v315
        %v956 = vunpack.c.h.b16 %v315
        %v957 = vunpack.c.l.b16 %v316
        %v958 = vunpack.c.h.b16 %v316
        %v959 = vunpack.c.l.b16 %v317
        %v960 = vunpack.c.h.b16 %v317
        %v961 = vunpack.c.l.b16 %v318
        %v962 = vunpack.c.h.b16 %v318
        %v963 = vunpack.c.l.b16 %v319
        %v964 = vunpack.c.h.b16 %v319
        %v965 = vunpack.c.l.b16 %v320
        %v966 = vunpack.c.h.b16 %v320
        %v967 = vunpack.c.l.b16 %v321
        %v968 = vunpack.c.h.b16 %v321
        %v969 = vunpack.c.l.b16 %v322
        %v970 = vunpack.c.h.b16 %v322
        %v971 = vunpack.c.l.b16 %v323
        %v972 = vunpack.c.h.b16 %v323
        %v973 = vunpack.c.l.b16 %v324
        %v974 = vunpack.c.h.b16 %v324
        %v975 = vunpack.c.l.b16 %v325
        %v976 = vunpack.c.h.b16 %v325
        %v977 = vunpack.c.l.b16 %v326
        %v978 = vunpack.c.h.b16 %v326
        %v979 = vunpack.c.l.b16 %v327
        %v980 = vunpack.c.h.b16 %v327
        %v981 = vunpack.c.l.b16 %v328
        %v982 = vunpack.c.h.b16 %v328
        %v983 = vunpack.c.l.b16 %v329
        %v984 = vunpack.c.h.b16 %v329
        %v985 = vunpack.c.l.b16 %v330
        %v986 = vunpack.c.h.b16 %v330
        %v987 = vunpack.c.l.b16 %v331
        %v988 = vunpack.c.h.b16 %v331
        %v989 = vunpack.c.l.b16 %v332
        %v990 = vunpack.c.h.b16 %v332
        %v991 = vunpack.c.l.b16 %v333
        %v992 = vunpack.c.h.b16 %v333
        %v993 = vunpack.c.l.b16 %v334
        %v994 = vunpack.c.h.b16 %v334
        %v995 = vunpack.c.l.b16 %v335
        %v996 = vunpack.c.h.b16 %v335
        %v997 = vunpack.c.l.b16 %v336
        %v998 = vunpack.c.h.b16 %v336
        %v999 = vunpack.c.l.b16 %v337
        %v1000 = vunpack.c.h.b16 %v337
        %v1001 = vunpack.c.l.b16 %v338
        %v1002 = vunpack.c.h.b16 %v338
        %v1003 = vunpack.c.l.b16 %v339
        %v1004 = vunpack.c.h.b16 %v339
        %v1005 = vunpack.c.l.b16 %v340
        %v1006 = vunpack.c.h.b16 %v340
        %v1007 = vunpack.c.l.b16 %v341
        %v1008 = vunpack.c.h.b16 %v341
        %v1009 = vunpack.c.l.b16 %v342
        %v1010 = vunpack.c.h.b16 %v342
        %v1011 = vunpack.c.l.b16 %v343
        %v1012 = vunpack.c.h.b16 %v343
        %v1013 = vunpack.c.l.b16 %v344
        %v1014 = vunpack.c.h.b16 %v344
        %v1015 = vunpack.c.l.b16 %v345
        %v1016 = vunpack.c.h.b16 %v345
        %v1017 = vunpack.c.l.b16 %v346
        %v1018 = vunpack.c.h.b16 %v346
        %v1019 = vunpack.c.l.b16 %v347
        %v1020 = vunpack.c.h.b16 %v347
        %v1021 = vunpack.c.l.b16 %v348
        %v1022 = vunpack.c.h.b16 %v348
        %v1023 = vunpack.c.l.b16 %v349
        %v1024 = vunpack.c.h.b16 %v349
        %v1025 = vunpack.c.l.b16 %v350
        %v1026 = vunpack.c.h.b16 %v350
        %v1027 = vunpack.c.l.b16 %v351
        %v1028 = vunpack.c.h.b16 %v351
        %v1029 = vunpack.c.l.b16 %v352
        %v1030 = vunpack.c.h.b16 %v352
        %v1031 = vunpack.c.l.b16 %v353
        %v1032 = vunpack.c.h.b16 %v353
        %v1033 = vunpack.c.l.b16 %v354
        %v1034 = vunpack.c.h.b16 %v354
        %v1035 = vpack.c.b16 %v867, %v843
        %v1036 = vpack.c.b16 %v868, %v844
        %v1037 = vpack.c.b16 %v869, %v845
        %v1038 = vpack.c.b16 %v870, %v846
        %v1039 = vpack.c.b16 %v871, %v847
        %v1040 = vpack.c.b16 %v872, %v848
        %v1041 = vpack.c.b16 %v873, %v849
        %v1042 = vpack.c.b16 %v874, %v850
        %v1043 = vpack.c.b16 %v875, %v851
        %v1044 = vpack.c.b16 %v876, %v852
        %v1045 = vpack.c.b16 %v877, %v853
        %v1046 = vpack.c.b16 %v878, %v854
        %v1047 = vpack.c.b16 %v879, %v855
        %v1048 = vpack.c.b16 %v880, %v856
        %v1049 = vpack.c.b16 %v881, %v857
        %v1050 = vpack.c.b16 %v882, %v858
        %v1051 = vpack.c.b16 %v883, %v859
        %v1052 = vpack.c.b16 %v884, %v860
        %v1053 = vpack.c.b16 %v885, %v861
        %v1054 = vpack.c.b16 %v886, %v862
        %v1055 = vpack.c.b16 %v887, %v863
        %v1056 = vpack.c.b16 %v888, %v864
        %v1057 = vpack.c.b16 %v889, %v865
        %v1058 = vpack.c.b16 %v890, %v866
        %v1059 = vpack.c.b16 %v915, %v891
        %v1060 = vpack.c.b16 %v916, %v892
        %v1061 = vpack.c.b16 %v917, %v893
        %v1062 = vpack.c.b16 %v918, %v894
        %v1063 = vpack.c.b16 %v919, %v895
        %v1064 = vpack.c.b16 %v920, %v896
        %v1065 = vpack.c.b16 %v921, %v897
        %v1066 = vpack.c.b16 %v922, %v898
        %v1067 = vpack.c.b16 %v923, %v899
        %v1068 = vpack.c.b16 %v924, %v900
        %v1069 = vpack.c.b16 %v925, %v901
        %v1070 = vpack.c.b16 %v926, %v902
        %v1071 = vpack.c.b16 %v927, %v903
        %v1072 = vpack.c.b16 %v928, %v904
        %v1073 = vpack.c.b16 %v929, %v905
        %v1074 = vpack.c.b16 %v930, %v906
        %v1075 = vpack.c.b16 %v931, %v907
        %v1076 = vpack.c.b16 %v932, %v908
        %v1077 = vpack.c.b16 %v933, %v909
        %v1078 = vpack.c.b16 %v934, %v910
        %v1079 = vpack.c.b16 %v935, %v911
        %v1080 = vpack.c.b16 %v936, %v912
        %v1081 = vpack.c.b16 %v937, %v913
        %v1082 = vpack.c.b16 %v938, %v914
        %v1083 = vpack.c.b16 %v963, %v939
        %v1084 = vpack.c.b16 %v964, %v940
        %v1085 = vpack.c.b16 %v965, %v941
        %v1086 = vpack.c.b16 %v966, %v942
        %v1087 = vpack.c.b16 %v967, %v943
        %v1088 = vpack.c.b16 %v968, %v944
        %v1089 = vpack.c.b16 %v969, %v945
        %v1090 = vpack.c.b16 %v970, %v946
        %v1091 = vpack.c.b16 %v971, %v947
        %v1092 = vpack.c.b16 %v972, %v948
        %v1093 = vpack.c.b16 %v973, %v949
        %v1094 = vpack.c.b16 %v974, %v950
        %v1095 = vpack.c.b16 %v975, %v951
        %v1096 = vpack.c.b16 %v976, %v952
        %v1097 = vpack.c.b16 %v977, %v953
        %v1098 = vpack.c.b16 %v978, %v954
        %v1099 = vpack.c.b16 %v979, %v955
        %v1100 = vpack.c.b16 %v980, %v956
        %v1101 = vpack.c.b16 %v981, %v957
        %v1102 = vpack.c.b16 %v982, %v958
        %v1103 = vpack.c.b16 %v983, %v959
        %v1104 = vpack.c.b16 %v984, %v960
        %v1105 = vpack.c.b16 %v985, %v961
        %v1106 = vpack.c.b16 %v986, %v962
        %v1107 = vpack.c.b16 %v1011, %v987
        %v1108 = vpack.c.b16 %v1012, %v988
        %v1109 = vpack.c.b16 %v1013, %v989
        %v1110 = vpack.c.b16 %v1014, %v990
        %v1111 = vpack.c.b16 %v1015, %v991
        %v1112 = vpack.c.b16 %v1016, %v992
        %v1113 = vpack.c.b16 %v1017, %v993
        %v1114 = vpack.c.b16 %v1018, %v994
        %v1115 = vpack.c.b16 %v1019, %v995
        %v1116 = vpack.c.b16 %v1020, %v996
        %v1117 = vpack.c.b16 %v1021, %v997
        %v1118 = vpack.c.b16 %v1022, %v998
        %v1119 = vpack.c.b16 %v1023, %v999
        %v1120 = vpack.c.b16 %v1024, %v1000
        %v1121 = vpack.c.b16 %v1025, %v1001
        %v1122 = vpack.c.b16 %v1026, %v1002
        %v1123 = vpack.c.b16 %v1027, %v1003
        %v1124 = vpack.c.b16 %v1028, %v1004
        %v1125 = vpack.c.b16 %v1029, %v1005
        %v1126 = vpack.c.b16 %v1030, %v1006
        %v1127 = vpack.c.b16 %v1031, %v1007
        %v1128 = vpack.c.b16 %v1032, %v1008
        %v1129 = vpack.c.b16 %v1033, %v1009
        %v1130 = vpack.c.b16 %v1034, %v1010
        %v1611 = vunpack.c.l.b16 %v355
        %v1612 = vunpack.c.l.b16 %v356
        %v1613 = vunpack.c.l.b16 %v357
        %v1614 = vunpack.c.l.b16 %v358
        %v1615 = vunpack.c.l.b16 %v359
        %v1616 = vunpack.c.l.b16 %v360
        %v1617 = vunpack.c.l.b16 %v361
        %v1618 = vunpack.c.l.b16 %v362
        %v1619 = vunpack.c.l.b16 %v363
        %v1620 = vunpack.c.l.b16 %v364
        %v1621 = vunpack.c.l.b16 %v365
        %v1622 = vunpack.c.l.b16 %v366
        %v1623 = vunpack.c.l.b16 %v367
        %v1624 = vunpack.c.l.b16 %v368
        %v1625 = vunpack.c.l.b16 %v369
        %v1626 = vunpack.c.l.b16 %v370
        %v1627 = vunpack.c.l.b16 %v371
        %v1628 = vunpack.c.l.b16 %v372
        %v1629 = vunpack.c.l.b16 %v373
        %v1630 = vunpack.c.l.b16 %v374
        %v1631 = vunpack.c.l.b16 %v375
        %v1632 = vunpack.c.l.b16 %v376
        %v1633 = vunpack.c.l.b16 %v377
        %v1634 = vunpack.c.l.b16 %v378
        %v1635 = vunpack.c.l.b16 %v379
        %v1636 = vunpack.c.l.b16 %v380
        %v1637 = vunpack.c.l.b16 %v381
        %v1638 = vunpack.c.l.b16 %v382
        %v1639 = vunpack.c.l.b16 %v383
        %v1640 = vunpack.c.l.b16 %v384
        %v1641 = vunpack.c.l.b16 %v385
        %v1642 = vunpack.c.l.b16 %v386
        %v1643 = vunpack.c.l.b16 %v387
        %v1644 = vunpack.c.l.b16 %v388
        %v1645 = vunpack.c.l.b16 %v389
        %v1646 = vunpack.c.l.b16 %v390
        %v1647 = vunpack.c.l.b16 %v391
        %v1648 = vunpack.c.l.b16 %v392
        %v1649 = vunpack.c.l.b16 %v393
        %v1650 = vunpack.c.l.b16 %v394
        %v1651 = vunpack.c.l.b16 %v395
        %v1652 = vunpack.c.l.b16 %v396
        %v1653 = vunpack.c.l.b16 %v397
        %v1654 = vunpack.c.l.b16 %v398
        %v1655 = vunpack.c.l.b16 %v399
        %v1656 = vunpack.c.l.b16 %v400
        %v1657 = vunpack.c.l.b16 %v401
        %v1658 = vunpack.c.l.b16 %v402
        %v1659 = vunpack.c.l.b16 %v403
        %v1660 = vunpack.c.l.b16 %v404
        %v1661 = vunpack.c.l.b16 %v405
        %v1662 = vunpack.c.l.b16 %v406
        %v1663 = vunpack.c.l.b16 %v407
        %v1664 = vunpack.c.l.b16 %v408
        %v1665 = vunpack.c.l.b16 %v409
        %v1666 = vunpack.c.l.b16 %v410
        %v1667 = vunpack.c.l.b16 %v411
        %v1668 = vunpack.c.l.b16 %v412
        %v1669 = vunpack.c.l.b16 %v413
        %v1670 = vunpack.c.l.b16 %v414
        %v1671 = vunpack.c.l.b16 %v415
        %v1672 = vunpack.c.l.b16 %v416
        %v1673 = vunpack.c.l.b16 %v417
        %v1674 = vunpack.c.l.b16 %v418
        %v1675 = vunpack.c.l.b16 %v419
        %v1676 = vunpack.c.l.b16 %v420
        %v1677 = vunpack.c.l.b16 %v421
        %v1678 = vunpack.c.l.b16 %v422
        %v1679 = vunpack.c.l.b16 %v423
        %v1680 = vunpack.c.l.b16 %v424
        %v1681 = vunpack.c.l.b16 %v425
        %v1682 = vunpack.c.l.b16 %v426
        %v1683 = vunpack.c.l.b16 %v427
        %v1684 = vunpack.c.l.b16 %v428
        %v1685 = vunpack.c.l.b16 %v429
        %v1686 = vunpack.c.l.b16 %v430
        %v1687 = vunpack.c.l.b16 %v431
        %v1688 = vunpack.c.l.b16 %v432
        %v1689 = vunpack.c.l.b16 %v433
        %v1690 = vunpack.c.l.b16 %v434
        %v1691 = vunpack.c.l.b16 %v435
        %v1692 = vunpack.c.l.b16 %v436
        %v1693 = vunpack.c.l.b16 %v437
        %v1694 = vunpack.c.l.b16 %v438
        %v1695 = vunpack.c.l.b16 %v439
        %v1696 = vunpack.c.l.b16 %v440
        %v1697 = vunpack.c.l.b16 %v441
        %v1698 = vunpack.c.l.b16 %v442
        %v1699 = vunpack.c.l.b16 %v443
        %v1700 = vunpack.c.l.b16 %v444
        %v1701 = vunpack.c.l.b16 %v445
        %v1702 = vunpack.c.l.b16 %v446
        %v1703 = vunpack.c.l.b16 %v447
        %v1704 = vunpack.c.l.b16 %v448
        %v1705 = vunpack.c.l.b16 %v449
        %v1706 = vunpack.c.l.b16 %v450
        %v1707 = vunpack.c.l.b16 %v451
        %v1708 = vunpack.c.l.b16 %v452
        %v1709 = vunpack.c.l.b16 %v453
        %v1710 = vunpack.c.l.b16 %v454
        %v1711 = vunpack.c.l.b16 %v455
        %v1712 = vunpack.c.l.b16 %v456
        %v1713 = vunpack.c.l.b16 %v457
        %v1714 = vunpack.c.l.b16 %v458
        %v1715 = vunpack.c.l.b16 %v459
        %v1716 = vunpack.c.l.b16 %v460
        %v1717 = vunpack.c.l.b16 %v461
        %v1718 = vunpack.c.l.b16 %v462
        %v1719 = vunpack.c.l.b16 %v463
        %v1720 = vunpack.c.l.b16 %v464
        %v1721 = vunpack.c.l.b16 %v465
        %v1722 = vunpack.c.l.b16 %v466
        %v1723 = vunpack.c.l.b16 %v467
        %v1724 = vunpack.c.l.b16 %v468
        %v1725 = vunpack.c.l.b16 %v469
        %v1726 = vunpack.c.l.b16 %v470
        %v1727 = vunpack.c.l.b16 %v471
        %v1728 = vunpack.c.l.b16 %v472
        %v1729 = vunpack.c.l.b16 %v473
        %v1730 = vunpack.c.l.b16 %v474
        %v1731 = vunpack.c.l.b16 %v475
        %v1732 = vunpack.c.l.b16 %v476
        %v1733 = vunpack.c.l.b16 %v477
        %v1734 = vunpack.c.l.b16 %v478
        %v1735 = vunpack.c.l.b16 %v479
        %v1736 = vunpack.c.l.b16 %v480
        %v1737 = vunpack.c.l.b16 %v481
        %v1738 = vunpack.c.l.b16 %v482
        %v1739 = vunpack.c.l.b16 %v483
        %v1740 = vunpack.c.l.b16 %v484
        %v1741 = vunpack.c.l.b16 %v485
        %v1742 = vunpack.c.l.b16 %v486
        %v1743 = vunpack.c.l.b16 %v487
        %v1744 = vunpack.c.l.b16 %v488
        %v1745 = vunpack.c.l.b16 %v489
        %v1746 = vunpack.c.l.b16 %v490
        %v1747 = vunpack.c.l.b16 %v491
        %v1748 = vunpack.c.l.b16 %v492
        %v1749 = vunpack.c.l.b16 %v493
        %v1750 = vunpack.c.l.b16 %v494
        %v1751 = vunpack.c.l.b16 %v495
        %v1752 = vunpack.c.l.b16 %v496
        %v1753 = vunpack.c.l.b16 %v497
        %v1754 = vunpack.c.l.b16 %v498
        %v1755 = vunpack.c.l.b16 %v499
        %v1756 = vunpack.c.l.b16 %v500
        %v1757 = vunpack.c.l.b16 %v501
        %v1758 = vunpack.c.l.b16 %v502
        %v1759 = vunpack.c.l.b16 %v503
        %v1760 = vunpack.c.l.b16 %v504
        %v1761 = vunpack.c.l.b16 %v505
        %v1762 = vunpack.c.l.b16 %v506
        %v1763 = vunpack.c.l.b16 %v507
        %v1764 = vunpack.c.l.b16 %v508
        %v1765 = vunpack.c.l.b16 %v509
        %v1766 = vunpack.c.l.b16 %v510
        %v1767 = vunpack.c.l.b16 %v511
        %v1768 = vunpack.c.l.b16 %v512
        %v1769 = vunpack.c.l.b16 %v513
        %v1770 = vunpack.c.l.b16 %v514
        %v1771 = vunpack.c.l.b16 %v515
        %v1772 = vunpack.c.l.b16 %v516
        %v1773 = vunpack.c.l.b16 %v517
        %v1774 = vunpack.c.l.b16 %v518
        %v1775 = vunpack.c.l.b16 %v519
        %v1776 = vunpack.c.l.b16 %v520
        %v1777 = vunpack.c.l.b16 %v521
        %v1778 = vunpack.c.l.b16 %v522
        %v1779 = vunpack.c.l.b16 %v523
        %v1780 = vunpack.c.l.b16 %v524
        %v1781 = vunpack.c.l.b16 %v525
        %v1782 = vunpack.c.l.b16 %v526
        %v1783 = vunpack.c.l.b16 %v527
        %v1784 = vunpack.c.l.b16 %v528
        %v1785 = vunpack.c.l.b16 %v529
        %v1786 = vunpack.c.l.b16 %v530
        %v1787 = vunpack.c.l.b16 %v531
        %v1788 = vunpack.c.l.b16 %v532
        %v1789 = vunpack.c.l.b16 %v533
        %v1790 = vunpack.c.l.b16 %v534
        %v1791 = vunpack.c.l.b16 %v535
        %v1792 = vunpack.c.l.b16 %v536
        %v1793 = vunpack.c.l.b16 %v537
        %v1794 = vunpack.c.l.b16 %v538
        %v1795 = vunpack.c.l.b16 %v539
        %v1796 = vunpack.c.l.b16 %v540
        %v1797 = vunpack.c.l.b16 %v541
        %v1798 = vunpack.c.l.b16 %v542
        %v1799 = vunpack.c.l.b16 %v543
        %v1800 = vunpack.c.l.b16 %v544
        %v1801 = vunpack.c.l.b16 %v545
        %v1802 = vunpack.c.l.b16 %v546
        %v1803 = vunpack.c.l.b16 %v547
        %v1804 = vunpack.c.l.b16 %v548
        %v1805 = vunpack.c.l.b16 %v549
        %v1806 = vunpack.c.l.b16 %v550
        %v1807 = vunpack.c.l.b16 %v551
        %v1808 = vunpack.c.l.b16 %v552
        %v1809 = vunpack.c.l.b16 %v553
        %v1810 = vunpack.c.l.b16 %v554
        %v1811 = vunpack.c.l.b16 %v555
        %v1812 = vunpack.c.l.b16 %v556
        %v1813 = vunpack.c.l.b16 %v557
        %v1814 = vunpack.c.l.b16 %v558
        %v1815 = vunpack.c.l.b16 %v559
        %v1816 = vunpack.c.l.b16 %v560
        %v1817 = vunpack.c.l.b16 %v561
        %v1818 = vunpack.c.l.b16 %v562
        %v1819 = vunpack.c.l.b16 %v563
        %v1820 = vunpack.c.l.b16 %v564
        %v1821 = vunpack.c.l.b16 %v565
        %v1822 = vunpack.c.l.b16 %v566
        %v1823 = vunpack.c.l.b16 %v567
        %v1824 = vunpack.c.l.b16 %v568
        %v1825 = vunpack.c.l.b16 %v569
        %v1826 = vunpack.c.l.b16 %v570
        %v1827 = vunpack.c.l.b16 %v571
        %v1828 = vunpack.c.l.b16 %v572
        %v1829 = vunpack.c.l.b16 %v573
        %v1830 = vunpack.c.l.b16 %v574
        %v1831 = vunpack.c.l.b16 %v575
        %v1832 = vunpack.c.l.b16 %v576
        %v1833 = vunpack.c.l.b16 %v577
        %v1834 = vunpack.c.l.b16 %v578
        %v1835 = vunpack.c.l.b16 %v579
        %v1836 = vunpack.c.l.b16 %v580
        %v1837 = vunpack.c.l.b16 %v581
        %v1838 = vunpack.c.l.b16 %v582
        %v1839 = vunpack.c.l.b16 %v583
        %v1840 = vunpack.c.l.b16 %v584
        %v1841 = vunpack.c.l.b16 %v585
        %v1842 = vunpack.c.l.b16 %v586
        %v1843 = vunpack.c.l.b16 %v587
        %v1844 = vunpack.c.l.b16 %v588
        %v1845 = vunpack.c.l.b16 %v589
        %v1846 = vunpack.c.l.b16 %v590
        %v1847 = vunpack.c.l.b16 %v591
        %v1848 = vunpack.c.l.b16 %v592
        %v1849 = vunpack.c.l.b16 %v593
        %v1850 = vunpack.c.l.b16 %v594
        %v1851 = vunpack.c.l.b16 %v595
        %v1852 = vunpack.c.l.b16 %v596
        %v1853 = vunpack.c.l.b16 %v597
        %v1854 = vunpack.c.l.b16 %v598
        %v1855 = vunpack.c.l.b16 %v599
        %v1856 = vunpack.c.l.b16 %v600
        %v1857 = vunpack.c.l.b16 %v601
        %v1858 = vunpack.c.l.b16 %v602
        %v1859 = vunpack.c.l.b16 %v603
        %v1860 = vunpack.c.l.b16 %v604
        %v1861 = vunpack.c.l.b16 %v605
        %v1862 = vunpack.c.l.b16 %v606
        %v1863 = vunpack.c.l.b16 %v607
        %v1864 = vunpack.c.l.b16 %v608
        %v1865 = vunpack.c.l.b16 %v609
        %v1866 = vunpack.c.l.b16 %v610
        %v1867 = vunpack.c.l.b16 %v611
        %v1868 = vunpack.c.l.b16 %v612
        %v1869 = vunpack.c.l.b16 %v613
        %v1870 = vunpack.c.l.b16 %v614
        %v1871 = vunpack.c.l.b16 %v615
        %v1872 = vunpack.c.l.b16 %v616
        %v1873 = vunpack.c.l.b16 %v617
        %v1874 = vunpack.c.l.b16 %v618
        %v1875 = vunpack.c.l.b16 %v619
        %v1876 = vunpack.c.l.b16 %v620
        %v1877 = vunpack.c.l.b16 %v621
        %v1878 = vunpack.c.l.b16 %v622
        %v1879 = vunpack.c.l.b16 %v623
        %v1880 = vunpack.c.l.b16 %v624
        %v1881 = vunpack.c.l.b16 %v625
        %v1882 = vunpack.c.l.b16 %v626
        %v1883 = vunpack.c.l.b16 %v627
        %v1884 = vunpack.c.l.b16 %v628
        %v1885 = vunpack.c.l.b16 %v629
        %v1886 = vunpack.c.l.b16 %v630
        %v1887 = vunpack.c.l.b16 %v631
        %v1888 = vunpack.c.l.b16 %v632
        %v1889 = vunpack.c.l.b16 %v633
        %v1890 = vunpack.c.l.b16 %v634
        %v1891 = vunpack.c.l.b16 %v635
        %v1892 = vunpack.c.l.b16 %v636
        %v1893 = vunpack.c.l.b16 %v637
        %v1894 = vunpack.c.l.b16 %v638
        %v1895 = vunpack.c.l.b16 %v639
        %v1896 = vunpack.c.l.b16 %v640
        %v1897 = vunpack.c.l.b16 %v641
        %v1898 = vunpack.c.l.b16 %v642
        %v1899 = vunpack.c.l.b16 %v643
        %v1900 = vunpack.c.l.b16 %v644
        %v1901 = vunpack.c.l.b16 %v645
        %v1902 = vunpack.c.l.b16 %v646
        %v1903 = vunpack.c.l.b16 %v647
        %v1904 = vunpack.c.l.b16 %v648
        %v1905 = vunpack.c.l.b16 %v649
        %v1906 = vunpack.c.l.b16 %v650
        %v1907 = vunpack.c.l.b16 %v651
        %v1908 = vunpack.c.l.b16 %v652
        %v1909 = vunpack.c.l.b16 %v653
        %v1910 = vunpack.c.l.b16 %v654
        %v1911 = vunpack.c.l.b16 %v655
        %v1912 = vunpack.c.l.b16 %v656
        %v1913 = vunpack.c.l.b16 %v657
        %v1914 = vunpack.c.l.b16 %v658
        %v1915 = vunpack.c.l.b16 %v659
        %v1916 = vunpack.c.l.b16 %v660
        %v1917 = vunpack.c.l.b16 %v661
        %v1918 = vunpack.c.l.b16 %v662
        %v1919 = vunpack.c.l.b16 %v663
        %v1920 = vunpack.c.l.b16 %v664
        %v1921 = vunpack.c.l.b16 %v665
        %v1922 = vunpack.c.l.b16 %v666
        %v1923 = vunpack.c.l.b16 %v667
        %v1924 = vunpack.c.l.b16 %v668
        %v1925 = vunpack.c.l.b16 %v669
        %v1926 = vunpack.c.l.b16 %v670
        %v1927 = vunpack.c.l.b16 %v671
        %v1928 = vunpack.c.l.b16 %v672
        %v1929 = vunpack.c.l.b16 %v673
        %v1930 = vunpack.c.l.b16 %v674
        %v1931 = vunpack.c.l.b16 %v675
        %v1932 = vunpack.c.l.b16 %v676
        %v1933 = vunpack.c.l.b16 %v677
        %v1934 = vunpack.c.l.b16 %v678
        %v1935 = vunpack.c.l.b16 %v679
        %v1936 = vunpack.c.l.b16 %v680
        %v1937 = vunpack.c.l.b16 %v681
        %v1938 = vunpack.c.l.b16 %v682
        %v1939 = vunpack.c.l.b16 %v683
        %v1940 = vunpack.c.l.b16 %v684
        %v1941 = vunpack.c.l.b16 %v685
        %v1942 = vunpack.c.l.b16 %v686
        %v1943 = vunpack.c.l.b16 %v687
        %v1944 = vunpack.c.l.b16 %v688
        %v1945 = vunpack.c.l.b16 %v689
        %v1946 = vunpack.c.l.b16 %v690
        %v1947 = vunpack.c.l.b16 %v691
        %v1948 = vunpack.c.l.b16 %v692
        %v1949 = vunpack.c.l.b16 %v693
        %v1950 = vunpack.c.l.b16 %v694
        %v1951 = vunpack.c.l.b16 %v695
        %v1952 = vunpack.c.l.b16 %v696
        %v1953 = vunpack.c.l.b16 %v697
        %v1954 = vunpack.c.l.b16 %v698
        %v1955 = vunpack.c.l.b16 %v699
        %v1956 = vunpack.c.l.b16 %v700
        %v1957 = vunpack.c.l.b16 %v701
        %v1958 = vunpack.c.l.b16 %v702
        %v1959 = vunpack.c.l.b16 %v703
        %v1960 = vunpack.c.l.b16 %v704
        %v1961 = vunpack.c.l.b16 %v705
        %v1962 = vunpack.c.l.b16 %v706
        %v1963 = vunpack.c.l.b16 %v707
        %v1964 = vunpack.c.l.b16 %v708
        %v1965 = vunpack.c.l.b16 %v709
        %v1966 = vunpack.c.l.b16 %v710
        %v1967 = vunpack.c.l.b16 %v711
        %v1968 = vunpack.c.l.b16 %v712
        %v1969 = vunpack.c.l.b16 %v713
        %v1970 = vunpack.c.l.b16 %v714
        %v1971 = vunpack.c.l.b16 %v715
        %v1972 = vunpack.c.l.b16 %v716
        %v1973 = vunpack.c.l.b16 %v717
        %v1974 = vunpack.c.l.b16 %v718
        %v1975 = vunpack.c.l.b16 %v719
        %v1976 = vunpack.c.l.b16 %v720
        %v1977 = vunpack.c.l.b16 %v721
        %v1978 = vunpack.c.l.b16 %v722
        %v1979 = vunpack.c.l.b16 %v723
        %v1980 = vunpack.c.l.b16 %v724
        %v1981 = vunpack.c.l.b16 %v725
        %v1982 = vunpack.c.l.b16 %v726
        %v1983 = vunpack.c.l.b16 %v727
        %v1984 = vunpack.c.l.b16 %v728
        %v1985 = vunpack.c.l.b16 %v729
        %v1986 = vunpack.c.l.b16 %v730
        %v1987 = vunpack.c.l.b16 %v731
        %v1988 = vunpack.c.l.b16 %v732
        %v1989 = vunpack.c.l.b16 %v733
        %v1990 = vunpack.c.l.b16 %v734
        %v1991 = vunpack.c.l.b16 %v735
        %v1992 = vunpack.c.l.b16 %v736
        %v1993 = vunpack.c.l.b16 %v737
        %v1994 = vunpack.c.l.b16 %v738
        %v1995 = vpack.c.b16 %v1612, %v1611
        %v1996 = vpack.c.b16 %v1614, %v1613
        %v1997 = vpack.c.b16 %v1616, %v1615
        %v1998 = vpack.c.b16 %v1618, %v1617
        %v1999 = vpack.c.b16 %v1620, %v1619
        %v2000 = vpack.c.b16 %v1622, %v1621
        %v2001 = vpack.c.b16 %v1624, %v1623
        %v2002 = vpack.c.b16 %v1626, %v1625
        %v2003 = vpack.c.b16 %v1628, %v1627
        %v2004 = vpack.c.b16 %v1630, %v1629
        %v2005 = vpack.c.b16 %v1632, %v1631
        %v2006 = vpack.c.b16 %v1634, %v1633
        %v2007 = vpack.c.b16 %v1636, %v1635
        %v2008 = vpack.c.b16 %v1638, %v1637
        %v2009 = vpack.c.b16 %v1640, %v1639
        %v2010 = vpack.c.b16 %v1642, %v1641
        %v2011 = vpack.c.b16 %v1644, %v1643
        %v2012 = vpack.c.b16 %v1646, %v1645
        %v2013 = vpack.c.b16 %v1648, %v1647
        %v2014 = vpack.c.b16 %v1650, %v1649
        %v2015 = vpack.c.b16 %v1652, %v1651
        %v2016 = vpack.c.b16 %v1654, %v1653
        %v2017 = vpack.c.b16 %v1656, %v1655
        %v2018 = vpack.c.b16 %v1658, %v1657
        %v2019 = vpack.c.b16 %v1660, %v1659
        %v2020 = vpack.c.b16 %v1662, %v1661
        %v2021 = vpack.c.b16 %v1664, %v1663
        %v2022 = vpack.c.b16 %v1666, %v1665
        %v2023 = vpack.c.b16 %v1668, %v1667
        %v2024 = vpack.c.b16 %v1670, %v1669
        %v2025 = vpack.c.b16 %v1672, %v1671
        %v2026 = vpack.c.b16 %v1674, %v1673
        %v2027 = vpack.c.b16 %v1676, %v1675
        %v2028 = vpack.c.b16 %v1678, %v1677
        %v2029 = vpack.c.b16 %v1680, %v1679
        %v2030 = vpack.c.b16 %v1682, %v1681
        %v2031 = vpack.c.b16 %v1684, %v1683
        %v2032 = vpack.c.b16 %v1686, %v1685
        %v2033 = vpack.c.b16 %v1688, %v1687
        %v2034 = vpack.c.b16 %v1690, %v1689
        %v2035 = vpack.c.b16 %v1692, %v1691
        %v2036 = vpack.c.b16 %v1694, %v1693
        %v2037 = vpack.c.b16 %v1696, %v1695
        %v2038 = vpack.c.b16 %v1698, %v1697
        %v2039 = vpack.c.b16 %v1700, %v1699
        %v2040 = vpack.c.b16 %v1702, %v1701
        %v2041 = vpack.c.b16 %v1704, %v1703
        %v2042 = vpack.c.b16 %v1706, %v1705
        %v2043 = vpack.c.b16 %v1708, %v1707
        %v2044 = vpack.c.b16 %v1710, %v1709
        %v2045 = vpack.c.b16 %v1712, %v1711
        %v2046 = vpack.c.b16 %v1714, %v1713
        %v2047 = vpack.c.b16 %v1716, %v1715
        %v2048 = vpack.c.b16 %v1718, %v1717
        %v2049 = vpack.c.b16 %v1720, %v1719
        %v2050 = vpack.c.b16 %v1722, %v1721
        %v2051 = vpack.c.b16 %v1724, %v1723
        %v2052 = vpack.c.b16 %v1726, %v1725
        %v2053 = vpack.c.b16 %v1728, %v1727
        %v2054 = vpack.c.b16 %v1730, %v1729
        %v2055 = vpack.c.b16 %v1732, %v1731
        %v2056 = vpack.c.b16 %v1734, %v1733
        %v2057 = vpack.c.b16 %v1736, %v1735
        %v2058 = vpack.c.b16 %v1738, %v1737
        %v2059 = vpack.c.b16 %v1740, %v1739
        %v2060 = vpack.c.b16 %v1742, %v1741
        %v2061 = vpack.c.b16 %v1744, %v1743
        %v2062 = vpack.c.b16 %v1746, %v1745
        %v2063 = vpack.c.b16 %v1748, %v1747
        %v2064 = vpack.c.b16 %v1750, %v1749
        %v2065 = vpack.c.b16 %v1752, %v1751
        %v2066 = vpack.c.b16 %v1754, %v1753
        %v2067 = vpack.c.b16 %v1756, %v1755
        %v2068 = vpack.c.b16 %v1758, %v1757
        %v2069 = vpack.c.b16 %v1760, %v1759
        %v2070 = vpack.c.b16 %v1762, %v1761
        %v2071 = vpack.c.b16 %v1764, %v1763
        %v2072 = vpack.c.b16 %v1766, %v1765
        %v2073 = vpack.c.b16 %v1768, %v1767
        %v2074 = vpack.c.b16 %v1770, %v1769
        %v2075 = vpack.c.b16 %v1772, %v1771
        %v2076 = vpack.c.b16 %v1774, %v1773
        %v2077 = vpack.c.b16 %v1776, %v1775
        %v2078 = vpack.c.b16 %v1778, %v1777
        %v2079 = vpack.c.b16 %v1780, %v1779
        %v2080 = vpack.c.b16 %v1782, %v1781
        %v2081 = vpack.c.b16 %v1784, %v1783
        %v2082 = vpack.c.b16 %v1786, %v1785
        %v2083 = vpack.c.b16 %v1788, %v1787
        %v2084 = vpack.c.b16 %v1790, %v1789
        %v2085 = vpack.c.b16 %v1792, %v1791
        %v2086 = vpack.c.b16 %v1794, %v1793
        %v2087 = vpack.c.b16 %v1796, %v1795
        %v2088 = vpack.c.b16 %v1798, %v1797
        %v2089 = vpack.c.b16 %v1800, %v1799
        %v2090 = vpack.c.b16 %v1802, %v1801
        %v2091 = vpack.c.b16 %v1804, %v1803
        %v2092 = vpack.c.b16 %v1806, %v1805
        %v2093 = vpack.c.b16 %v1808, %v1807
        %v2094 = vpack.c.b16 %v1810, %v1809
        %v2095 = vpack.c.b16 %v1812, %v1811
        %v2096 = vpack.c.b16 %v1814, %v1813
        %v2097 = vpack.c.b16 %v1816, %v1815
        %v2098 = vpack.c.b16 %v1818, %v1817
        %v2099 = vpack.c.b16 %v1820, %v1819
        %v2100 = vpack.c.b16 %v1822, %v1821
        %v2101 = vpack.c.b16 %v1824, %v1823
        %v2102 = vpack.c.b16 %v1826, %v1825
        %v2103 = vpack.c.b16 %v1828, %v1827
        %v2104 = vpack.c.b16 %v1830, %v1829
        %v2105 = vpack.c.b16 %v1832, %v1831
        %v2106 = vpack.c.b16 %v1834, %v1833
        %v2107 = vpack.c.b16 %v1836, %v1835
        %v2108 = vpack.c.b16 %v1838, %v1837
        %v2109 = vpack.c.b16 %v1840, %v1839
        %v2110 = vpack.c.b16 %v1842, %v1841
        %v2111 = vpack.c.b16 %v1844, %v1843
        %v2112 = vpack.c.b16 %v1846, %v1845
        %v2113 = vpack.c.b16 %v1848, %v1847
        %v2114 = vpack.c.b16 %v1850, %v1849
        %v2115 = vpack.c.b16 %v1852, %v1851
        %v2116 = vpack.c.b16 %v1854, %v1853
        %v2117 = vpack.c.b16 %v1856, %v1855
        %v2118 = vpack.c.b16 %v1858, %v1857
        %v2119 = vpack.c.b16 %v1860, %v1859
        %v2120 = vpack.c.b16 %v1862, %v1861
        %v2121 = vpack.c.b16 %v1864, %v1863
        %v2122 = vpack.c.b16 %v1866, %v1865
        %v2123 = vpack.c.b16 %v1868, %v1867
        %v2124 = vpack.c.b16 %v1870, %v1869
        %v2125 = vpack.c.b16 %v1872, %v1871
        %v2126 = vpack.c.b16 %v1874, %v1873
        %v2127 = vpack.c.b16 %v1876, %v1875
        %v2128 = vpack.c.b16 %v1878, %v1877
        %v2129 = vpack.c.b16 %v1880, %v1879
        %v2130 = vpack.c.b16 %v1882, %v1881
        %v2131 = vpack.c.b16 %v1884, %v1883
        %v2132 = vpack.c.b16 %v1886, %v1885
        %v2133 = vpack.c.b16 %v1888, %v1887
        %v2134 = vpack.c.b16 %v1890, %v1889
        %v2135 = vpack.c.b16 %v1892, %v1891
        %v2136 = vpack.c.b16 %v1894, %v1893
        %v2137 = vpack.c.b16 %v1896, %v1895
        %v2138 = vpack.c.b16 %v1898, %v1897
        %v2139 = vpack.c.b16 %v1900, %v1899
        %v2140 = vpack.c.b16 %v1902, %v1901
        %v2141 = vpack.c.b16 %v1904, %v1903
        %v2142 = vpack.c.b16 %v1906, %v1905
        %v2143 = vpack.c.b16 %v1908, %v1907
        %v2144 = vpack.c.b16 %v1910, %v1909
        %v2145 = vpack.c.b16 %v1912, %v1911
        %v2146 = vpack.c.b16 %v1914, %v1913
        %v2147 = vpack.c.b16 %v1916, %v1915
        %v2148 = vpack.c.b16 %v1918, %v1917
        %v2149 = vpack.c.b16 %v1920, %v1919
        %v2150 = vpack.c.b16 %v1922, %v1921
        %v2151 = vpack.c.b16 %v1924, %v1923
        %v2152 = vpack.c.b16 %v1926, %v1925
        %v2153 = vpack.c.b16 %v1928, %v1927
        %v2154 = vpack.c.b16 %v1930, %v1929
        %v2155 = vpack.c.b16 %v1932, %v1931
        %v2156 = vpack.c.b16 %v1934, %v1933
        %v2157 = vpack.c.b16 %v1936, %v1935
        %v2158 = vpack.c.b16 %v1938, %v1937
        %v2159 = vpack.c.b16 %v1940, %v1939
        %v2160 = vpack.c.b16 %v1942, %v1941
        %v2161 = vpack.c.b16 %v1944, %v1943
        %v2162 = vpack.c.b16 %v1946, %v1945
        %v2163 = vpack.c.b16 %v1948, %v1947
        %v2164 = vpack.c.b16 %v1950, %v1949
        %v2165 = vpack.c.b16 %v1952, %v1951
        %v2166 = vpack.c.b16 %v1954, %v1953
        %v2167 = vpack.c.b16 %v1956, %v1955
        %v2168 = vpack.c.b16 %v1958, %v1957
        %v2169 = vpack.c.b16 %v1960, %v1959
        %v2170 = vpack.c.b16 %v1962, %v1961
        %v2171 = vpack.c.b16 %v1964, %v1963
        %v2172 = vpack.c.b16 %v1966, %v1965
        %v2173 = vpack.c.b16 %v1968, %v1967
        %v2174 = vpack.c.b16 %v1970, %v1969
        %v2175 = vpack.c.b16 %v1972, %v1971
        %v2176 = vpack.c.b16 %v1974, %v1973
        %v2177 = vpack.c.b16 %v1976, %v1975
        %v2178 = vpack.c.b16 %v1978, %v1977
        %v2179 = vpack.c.b16 %v1980, %v1979
        %v2180 = vpack.c.b16 %v1982, %v1981
        %v2181 = vpack.c.b16 %v1984, %v1983
        %v2182 = vpack.c.b16 %v1986, %v1985
        %v2183 = vpack.c.b16 %v1988, %v1987
        %v2184 = vpack.c.b16 %v1990, %v1989
        %v2185 = vpack.c.b16 %v1992, %v1991
        %v2186 = vpack.c.b16 %v1994, %v1993
        %2379 = vmatprep.subr.bf16.mxu0 0
        %2380 = vmatpush1.bf16.msra.mxu0 %v1995
        %2381 = vmatprep.subr.bf16.mxu0 0
        %2382 = vmatpush1.bf16.msra.mxu0 %v1996
        %2383 = vmatprep.subr.bf16.mxu0 0
        %2384 = vmatpush1.bf16.msra.mxu0 %v1997
        %2385 = vmatprep.subr.bf16.mxu0 0
        %2386 = vmatpush1.bf16.msra.mxu0 %v1998
        %2387 = vmatprep.subr.bf16.mxu0 0
        %2388 = vmatpush1.bf16.msra.mxu0 %v1999
        %2389 = vmatprep.subr.bf16.mxu0 0
        %2390 = vmatpush1.bf16.msra.mxu0 %v2000
        %2391 = vmatprep.subr.bf16.mxu0 0
        %2392 = vmatpush1.bf16.msra.mxu0 %v2001
        %2393 = vmatprep.subr.bf16.mxu0 0
        %2394 = vmatpush1.bf16.msra.mxu0 %v2002
        %2395 = vmatprep.subr.bf16.mxu0 0
        %2396 = vmatpush1.bf16.msra.mxu0 %v2003
        %2397 = vmatprep.subr.bf16.mxu0 0
        %2398 = vmatpush1.bf16.msra.mxu0 %v2004
        %2399 = vmatprep.subr.bf16.mxu0 0
        %2400 = vmatpush1.bf16.msra.mxu0 %v2005
        %2401 = vmatprep.subr.bf16.mxu0 0
        %2402 = vmatpush1.bf16.msra.mxu0 %v2006
        %2403 = vmatprep.subr.bf16.mxu0 0
        %2404 = vmatpush1.bf16.msra.mxu0 %v2007
        %2405 = vmatprep.subr.bf16.mxu0 0
        %2406 = vmatpush1.bf16.msra.mxu0 %v2008
        %2407 = vmatprep.subr.bf16.mxu0 0
        %2408 = vmatpush1.bf16.msra.mxu0 %v2009
        %2409 = vmatprep.subr.bf16.mxu0 0
        %2410 = vmatpush1.bf16.msra.mxu0 %v2010
        %2411 = vmatprep.mubr.bf16.mxu0 %v1036
        %2412 = vmatmul.mubr.bf16.gmra.mrb[0].mxu0 %v1035
        %v2413 = vpop.f32.mrb[0].mxu0
        %v2414 = vadd.f32 %v739, %v2413
        %v2415 = vpop.f32.mrb[0].mxu0
        %v2416 = vpop.f32.mrb[0].mxu0
        %v2417 = vadd.f32 %v740, %v2416
        %v2418 = vpop.f32.mrb[0].mxu0
        %2419 = vmatprep.mubr.bf16.mxu0 %v1060
        %2420 = vmatmul.mubr.bf16.gmra.mrb[0].mxu0 %v1059
        %v2421 = vpop.f32.mrb[0].mxu0
        %v2422 = vadd.f32 %v741, %v2421
        %v2423 = vpop.f32.mrb[0].mxu0
        %v2424 = vpop.f32.mrb[0].mxu0
        %v2425 = vadd.f32 %v742, %v2424
        %v2426 = vpop.f32.mrb[0].mxu0
        %2427 = vmatprep.mubr.bf16.mxu0 %v1084
        %2428 = vmatmul.mubr.bf16.gmra.mrb[0].mxu0 %v1083
        %v2429 = vpop.f32.mrb[0].mxu0
        %v2430 = vadd.f32 %v743, %v2429
        %v2431 = vpop.f32.mrb[0].mxu0
        %v2432 = vpop.f32.mrb[0].mxu0
        %v2433 = vadd.f32 %v744, %v2432
        %v2434 = vpop.f32.mrb[0].mxu0
        %2435 = vmatprep.mubr.bf16.mxu0 %v1108
        %2436 = vmatmul.mubr.bf16.gmra.mrb[0].mxu0 %v1107
        %v2437 = vpop.f32.mrb[0].mxu0
        %v2438 = vadd.f32 %v745, %v2437
        %v2439 = vpop.f32.mrb[0].mxu0
        %v2440 = vpop.f32.mrb[0].mxu0
        %v2441 = vadd.f32 %v746, %v2440
        %v2442 = vpop.f32.mrb[0].mxu0
        %2443 = vdwg.mxu0
        %2444 = vmatprep.subr.bf16.mxu0 0
        %2445 = vmatpush1.bf16.msra.mxu0 %v2011
        %2446 = vmatprep.subr.bf16.mxu0 0
        %2447 = vmatpush1.bf16.msra.mxu0 %v2012
        %2448 = vmatprep.subr.bf16.mxu0 0
        %2449 = vmatpush1.bf16.msra.mxu0 %v2013
        %2450 = vmatprep.subr.bf16.mxu0 0
        %2451 = vmatpush1.bf16.msra.mxu0 %v2014
        %2452 = vmatprep.subr.bf16.mxu0 0
        %2453 = vmatpush1.bf16.msra.mxu0 %v2015
        %2454 = vmatprep.subr.bf16.mxu0 0
        %2455 = vmatpush1.bf16.msra.mxu0 %v2016
        %2456 = vmatprep.subr.bf16.mxu0 0
        %2457 = vmatpush1.bf16.msra.mxu0 %v2017
        %2458 = vmatprep.subr.bf16.mxu0 0
        %2459 = vmatpush1.bf16.msra.mxu0 %v2018
        %2460 = vmatprep.subr.bf16.mxu0 0
        %2461 = vmatpush1.bf16.msra.mxu0 %v2019
        %2462 = vmatprep.subr.bf16.mxu0 0
        %2463 = vmatpush1.bf16.msra.mxu0 %v2020
        %2464 = vmatprep.subr.bf16.mxu0 0
        %2465 = vmatpush1.bf16.msra.mxu0 %v2021
        %2466 = vmatprep.subr.bf16.mxu0 0
        %2467 = vmatpush1.bf16.msra.mxu0 %v2022
        %2468 = vmatprep.subr.bf16.mxu0 0
        %2469 = vmatpush1.bf16.msra.mxu0 %v2023
        %2470 = vmatprep.subr.bf16.mxu0 0
        %2471 = vmatpush1.bf16.msra.mxu0 %v2024
        %2472 = vmatprep.subr.bf16.mxu0 0
        %2473 = vmatpush1.bf16.msra.mxu0 %v2025
        %2474 = vmatprep.subr.bf16.mxu0 0
        %2475 = vmatpush1.bf16.msra.mxu0 %v2026
        %2476 = vmatprep.mubr.bf16.mxu0 %v1038
        %2477 = vmatmul.mubr.bf16.gmra.mrb[0].mxu0 %v1037
        %v2478 = vpop.f32.mrb[0].mxu0
        %v2479 = vadd.f32 %v2414, %v2478
        %v2480 = vpop.f32.mrb[0].mxu0
        %v2481 = vpop.f32.mrb[0].mxu0
        %v2482 = vadd.f32 %v2417, %v2481
        %v2483 = vpop.f32.mrb[0].mxu0
        %2484 = vmatprep.mubr.bf16.mxu0 %v1062
        %2485 = vmatmul.mubr.bf16.gmra.mrb[0].mxu0 %v1061
        %v2486 = vpop.f32.mrb[0].mxu0
        %v2487 = vadd.f32 %v2422, %v2486
        %v2488 = vpop.f32.mrb[0].mxu0
        %v2489 = vpop.f32.mrb[0].mxu0
        %v2490 = vadd.f32 %v2425, %v2489
        %v2491 = vpop.f32.mrb[0].mxu0
        %2492 = vmatprep.mubr.bf16.mxu0 %v1086
        %2493 = vmatmul.mubr.bf16.gmra.mrb[0].mxu0 %v1085
        %v2494 = vpop.f32.mrb[0].mxu0
        %v2495 = vadd.f32 %v2430, %v2494
        %v2496 = vpop.f32.mrb[0].mxu0
        %v2497 = vpop.f32.mrb[0].mxu0
        %v2498 = vadd.f32 %v2433, %v2497
        %v2499 = vpop.f32.mrb[0].mxu0
        %2500 = vmatprep.mubr.bf16.mxu0 %v1110
        %2501 = vmatmul.mubr.bf16.gmra.mrb[0].mxu0 %v1109
        %v2502 = vpop.f32.mrb[0].mxu0
        %v2503 = vadd.f32 %v2438, %v2502
        %v2504 = vpop.f32.mrb[0].mxu0
        %v2505 = vpop.f32.mrb[0].mxu0
        %v2506 = vadd.f32 %v2441, %v2505
        %v2507 = vpop.f32.mrb[0].mxu0
        %2508 = vdwg.mxu0
        %2509 = vmatprep.subr.bf16.mxu0 0
        %2510 = vmatpush1.bf16.msra.mxu0 %v2027
        %2511 = vmatprep.subr.bf16.mxu0 0
        %2512 = vmatpush1.bf16.msra.mxu0 %v2028
        %2513 = vmatprep.subr.bf16.mxu0 0
        %2514 = vmatpush1.bf16.msra.mxu0 %v2029
        %2515 = vmatprep.subr.bf16.mxu0 0
        %2516 = vmatpush1.bf16.msra.mxu0 %v2030
        %2517 = vmatprep.subr.bf16.mxu0 0
        %2518 = vmatpush1.bf16.msra.mxu0 %v2031
        %2519 = vmatprep.subr.bf16.mxu0 0
        %2520 = vmatpush1.bf16.msra.mxu0 %v2032
        %2521 = vmatprep.subr.bf16.mxu0 0
        %2522 = vmatpush1.bf16.msra.mxu0 %v2033
        %2523 = vmatprep.subr.bf16.mxu0 0
        %2524 = vmatpush1.bf16.msra.mxu0 %v2034
        %2525 = vmatprep.subr.bf16.mxu0 0
        %2526 = vmatpush1.bf16.msra.mxu0 %v2035
        %2527 = vmatprep.subr.bf16.mxu0 0
        %2528 = vmatpush1.bf16.msra.mxu0 %v2036
        %2529 = vmatprep.subr.bf16.mxu0 0
        %2530 = vmatpush1.bf16.msra.mxu0 %v2037
        %2531 = vmatprep.subr.bf16.mxu0 0
        %2532 = vmatpush1.bf16.msra.mxu0 %v2038
        %2533 = vmatprep.subr.bf16.mxu0 0
        %2534 = vmatpush1.bf16.msra.mxu0 %v2039
        %2535 = vmatprep.subr.bf16.mxu0 0
        %2536 = vmatpush1.bf16.msra.mxu0 %v2040
        %2537 = vmatprep.subr.bf16.mxu0 0
        %2538 = vmatpush1.bf16.msra.mxu0 %v2041
        %2539 = vmatprep.subr.bf16.mxu0 0
        %2540 = vmatpush1.bf16.msra.mxu0 %v2042
        %2541 = vmatprep.mubr.bf16.mxu0 %v1040
        %2542 = vmatmul.mubr.bf16.gmra.mrb[0].mxu0 %v1039
        %v2543 = vpop.f32.mrb[0].mxu0
        %v2544 = vadd.f32 %v2479, %v2543
        %v2545 = vpop.f32.mrb[0].mxu0
        %v2546 = vpop.f32.mrb[0].mxu0
        %v2547 = vadd.f32 %v2482, %v2546
        %v2548 = vpop.f32.mrb[0].mxu0
        %2549 = vmatprep.mubr.bf16.mxu0 %v1064
        %2550 = vmatmul.mubr.bf16.gmra.mrb[0].mxu0 %v1063
        %v2551 = vpop.f32.mrb[0].mxu0
        %v2552 = vadd.f32 %v2487, %v2551
        %v2553 = vpop.f32.mrb[0].mxu0
        %v2554 = vpop.f32.mrb[0].mxu0
        %v2555 = vadd.f32 %v2490, %v2554
        %v2556 = vpop.f32.mrb[0].mxu0
        %2557 = vmatprep.mubr.bf16.mxu0 %v1088
        %2558 = vmatmul.mubr.bf16.gmra.mrb[0].mxu0 %v1087
        %v2559 = vpop.f32.mrb[0].mxu0
        %v2560 = vadd.f32 %v2495, %v2559
        %v2561 = vpop.f32.mrb[0].mxu0
        %v2562 = vpop.f32.mrb[0].mxu0
        %v2563 = vadd.f32 %v2498, %v2562
        %v2564 = vpop.f32.mrb[0].mxu0
        %2565 = vmatprep.mubr.bf16.mxu0 %v1112
        %2566 = vmatmul.mubr.bf16.gmra.mrb[0].mxu0 %v1111
        %v2567 = vpop.f32.mrb[0].mxu0
        %v2568 = vadd.f32 %v2503, %v2567
        %v2569 = vpop.f32.mrb[0].mxu0
        %v2570 = vpop.f32.mrb[0].mxu0
        %v2571 = vadd.f32 %v2506, %v2570
        %v2572 = vpop.f32.mrb[0].mxu0
        %2573 = vdwg.mxu0
        %2574 = vmatprep.subr.bf16.mxu0 0
        %2575 = vmatpush1.bf16.msra.mxu0 %v2043
        %2576 = vmatprep.subr.bf16.mxu0 0
        %2577 = vmatpush1.bf16.msra.mxu0 %v2044
        %2578 = vmatprep.subr.bf16.mxu0 0
        %2579 = vmatpush1.bf16.msra.mxu0 %v2045
        %2580 = vmatprep.subr.bf16.mxu0 0
        %2581 = vmatpush1.bf16.msra.mxu0 %v2046
        %2582 = vmatprep.subr.bf16.mxu0 0
        %2583 = vmatpush1.bf16.msra.mxu0 %v2047
        %2584 = vmatprep.subr.bf16.mxu0 0
        %2585 = vmatpush1.bf16.msra.mxu0 %v2048
        %2586 = vmatprep.subr.bf16.mxu0 0
        %2587 = vmatpush1.bf16.msra.mxu0 %v2049
        %2588 = vmatprep.subr.bf16.mxu0 0
        %2589 = vmatpush1.bf16.msra.mxu0 %v2050
        %2590 = vmatprep.subr.bf16.mxu0 0
        %2591 = vmatpush1.bf16.msra.mxu0 %v2051
        %2592 = vmatprep.subr.bf16.mxu0 0
        %2593 = vmatpush1.bf16.msra.mxu0 %v2052
        %2594 = vmatprep.subr.bf16.mxu0 0
        %2595 = vmatpush1.bf16.msra.mxu0 %v2053
        %2596 = vmatprep.subr.bf16.mxu0 0
        %2597 = vmatpush1.bf16.msra.mxu0 %v2054
        %2598 = vmatprep.subr.bf16.mxu0 0
        %2599 = vmatpush1.bf16.msra.mxu0 %v2055
        %2600 = vmatprep.subr.bf16.mxu0 0
        %2601 = vmatpush1.bf16.msra.mxu0 %v2056
        %2602 = vmatprep.subr.bf16.mxu0 0
        %2603 = vmatpush1.bf16.msra.mxu0 %v2057
        %2604 = vmatprep.subr.bf16.mxu0 0
        %2605 = vmatpush1.bf16.msra.mxu0 %v2058
        %2606 = vmatprep.mubr.bf16.mxu0 %v1042
        %2607 = vmatmul.mubr.bf16.gmra.mrb[0].mxu0 %v1041
        %v2608 = vpop.f32.mrb[0].mxu0
        %v2609 = vadd.f32 %v2544, %v2608
        %v2610 = vpop.f32.mrb[0].mxu0
        %v2611 = vpop.f32.mrb[0].mxu0
        %v2612 = vadd.f32 %v2547, %v2611
        %v2613 = vpop.f32.mrb[0].mxu0
        %2614 = vmatprep.mubr.bf16.mxu0 %v1066
        %2615 = vmatmul.mubr.bf16.gmra.mrb[0].mxu0 %v1065
        %v2616 = vpop.f32.mrb[0].mxu0
        %v2617 = vadd.f32 %v2552, %v2616
        %v2618 = vpop.f32.mrb[0].mxu0
        %v2619 = vpop.f32.mrb[0].mxu0
        %v2620 = vadd.f32 %v2555, %v2619
        %v2621 = vpop.f32.mrb[0].mxu0
        %2622 = vmatprep.mubr.bf16.mxu0 %v1090
        %2623 = vmatmul.mubr.bf16.gmra.mrb[0].mxu0 %v1089
        %v2624 = vpop.f32.mrb[0].mxu0
        %v2625 = vadd.f32 %v2560, %v2624
        %v2626 = vpop.f32.mrb[0].mxu0
        %v2627 = vpop.f32.mrb[0].mxu0
        %v2628 = vadd.f32 %v2563, %v2627
        %v2629 = vpop.f32.mrb[0].mxu0
        %2630 = vmatprep.mubr.bf16.mxu0 %v1114
        %2631 = vmatmul.mubr.bf16.gmra.mrb[0].mxu0 %v1113
        %v2632 = vpop.f32.mrb[0].mxu0
        %v2633 = vadd.f32 %v2568, %v2632
        %v2634 = vpop.f32.mrb[0].mxu0
        %v2635 = vpop.f32.mrb[0].mxu0
        %v2636 = vadd.f32 %v2571, %v2635
        %v2637 = vpop.f32.mrb[0].mxu0
        %2638 = vdwg.mxu0
        %2639 = vmatprep.subr.bf16.mxu0 0
        %2640 = vmatpush1.bf16.msra.mxu0 %v2059
        %2641 = vmatprep.subr.bf16.mxu0 0
        %2642 = vmatpush1.bf16.msra.mxu0 %v2060
        %2643 = vmatprep.subr.bf16.mxu0 0
        %2644 = vmatpush1.bf16.msra.mxu0 %v2061
        %2645 = vmatprep.subr.bf16.mxu0 0
        %2646 = vmatpush1.bf16.msra.mxu0 %v2062
        %2647 = vmatprep.subr.bf16.mxu0 0
        %2648 = vmatpush1.bf16.msra.mxu0 %v2063
        %2649 = vmatprep.subr.bf16.mxu0 0
        %2650 = vmatpush1.bf16.msra.mxu0 %v2064
        %2651 = vmatprep.subr.bf16.mxu0 0
        %2652 = vmatpush1.bf16.msra.mxu0 %v2065
        %2653 = vmatprep.subr.bf16.mxu0 0
        %2654 = vmatpush1.bf16.msra.mxu0 %v2066
        %2655 = vmatprep.subr.bf16.mxu0 0
        %2656 = vmatpush1.bf16.msra.mxu0 %v2067
        %2657 = vmatprep.subr.bf16.mxu0 0
        %2658 = vmatpush1.bf16.msra.mxu0 %v2068
        %2659 = vmatprep.subr.bf16.mxu0 0
        %2660 = vmatpush1.bf16.msra.mxu0 %v2069
        %2661 = vmatprep.subr.bf16.mxu0 0
        %2662 = vmatpush1.bf16.msra.mxu0 %v2070
        %2663 = vmatprep.subr.bf16.mxu0 0
        %2664 = vmatpush1.bf16.msra.mxu0 %v2071
        %2665 = vmatprep.subr.bf16.mxu0 0
        %2666 = vmatpush1.bf16.msra.mxu0 %v2072
        %2667 = vmatprep.subr.bf16.mxu0 0
        %2668 = vmatpush1.bf16.msra.mxu0 %v2073
        %2669 = vmatprep.subr.bf16.mxu0 0
        %2670 = vmatpush1.bf16.msra.mxu0 %v2074
        %2671 = vmatprep.mubr.bf16.mxu0 %v1044
        %2672 = vmatmul.mubr.bf16.gmra.mrb[0].mxu0 %v1043
        %v2673 = vpop.f32.mrb[0].mxu0
        %v2674 = vadd.f32 %v2609, %v2673
        %v2675 = vpop.f32.mrb[0].mxu0
        %v2676 = vpop.f32.mrb[0].mxu0
        %v2677 = vadd.f32 %v2612, %v2676
        %v2678 = vpop.f32.mrb[0].mxu0
        %2679 = vmatprep.mubr.bf16.mxu0 %v1068
        %2680 = vmatmul.mubr.bf16.gmra.mrb[0].mxu0 %v1067
        %v2681 = vpop.f32.mrb[0].mxu0
        %v2682 = vadd.f32 %v2617, %v2681
        %v2683 = vpop.f32.mrb[0].mxu0
        %v2684 = vpop.f32.mrb[0].mxu0
        %v2685 = vadd.f32 %v2620, %v2684
        %v2686 = vpop.f32.mrb[0].mxu0
        %2687 = vmatprep.mubr.bf16.mxu0 %v1092
        %2688 = vmatmul.mubr.bf16.gmra.mrb[0].mxu0 %v1091
        %v2689 = vpop.f32.mrb[0].mxu0
        %v2690 = vadd.f32 %v2625, %v2689
        %v2691 = vpop.f32.mrb[0].mxu0
        %v2692 = vpop.f32.mrb[0].mxu0
        %v2693 = vadd.f32 %v2628, %v2692
        %v2694 = vpop.f32.mrb[0].mxu0
        %2695 = vmatprep.mubr.bf16.mxu0 %v1116
        %2696 = vmatmul.mubr.bf16.gmra.mrb[0].mxu0 %v1115
        %v2697 = vpop.f32.mrb[0].mxu0
        %v2698 = vadd.f32 %v2633, %v2697
        %v2699 = vpop.f32.mrb[0].mxu0
        %v2700 = vpop.f32.mrb[0].mxu0
        %v2701 = vadd.f32 %v2636, %v2700
        %v2702 = vpop.f32.mrb[0].mxu0
        %2703 = vdwg.mxu0
        %2704 = vmatprep.subr.bf16.mxu0 0
        %2705 = vmatpush1.bf16.msra.mxu0 %v2075
        %2706 = vmatprep.subr.bf16.mxu0 0
        %2707 = vmatpush1.bf16.msra.mxu0 %v2076
        %2708 = vmatprep.subr.bf16.mxu0 0
        %2709 = vmatpush1.bf16.msra.mxu0 %v2077
        %2710 = vmatprep.subr.bf16.mxu0 0
        %2711 = vmatpush1.bf16.msra.mxu0 %v2078
        %2712 = vmatprep.subr.bf16.mxu0 0
        %2713 = vmatpush1.bf16.msra.mxu0 %v2079
        %2714 = vmatprep.subr.bf16.mxu0 0
        %2715 = vmatpush1.bf16.msra.mxu0 %v2080
        %2716 = vmatprep.subr.bf16.mxu0 0
        %2717 = vmatpush1.bf16.msra.mxu0 %v2081
        %2718 = vmatprep.subr.bf16.mxu0 0
        %2719 = vmatpush1.bf16.msra.mxu0 %v2082
        %2720 = vmatprep.subr.bf16.mxu0 0
        %2721 = vmatpush1.bf16.msra.mxu0 %v2083
        %2722 = vmatprep.subr.bf16.mxu0 0
        %2723 = vmatpush1.bf16.msra.mxu0 %v2084
        %2724 = vmatprep.subr.bf16.mxu0 0
        %2725 = vmatpush1.bf16.msra.mxu0 %v2085
        %2726 = vmatprep.subr.bf16.mxu0 0
        %2727 = vmatpush1.bf16.msra.mxu0 %v2086
        %2728 = vmatprep.subr.bf16.mxu0 0
        %2729 = vmatpush1.bf16.msra.mxu0 %v2087
        %2730 = vmatprep.subr.bf16.mxu0 0
        %2731 = vmatpush1.bf16.msra.mxu0 %v2088
        %2732 = vmatprep.subr.bf16.mxu0 0
        %2733 = vmatpush1.bf16.msra.mxu0 %v2089
        %2734 = vmatprep.subr.bf16.mxu0 0
        %2735 = vmatpush1.bf16.msra.mxu0 %v2090
        %2736 = vmatprep.mubr.bf16.mxu0 %v1046
        %2737 = vmatmul.mubr.bf16.gmra.mrb[0].mxu0 %v1045
        %v2738 = vpop.f32.mrb[0].mxu0
        %v2739 = vadd.f32 %v2674, %v2738
        %v2740 = vpop.f32.mrb[0].mxu0
        %v2741 = vpop.f32.mrb[0].mxu0
        %v2742 = vadd.f32 %v2677, %v2741
        %v2743 = vpop.f32.mrb[0].mxu0
        %2744 = vmatprep.mubr.bf16.mxu0 %v1070
        %2745 = vmatmul.mubr.bf16.gmra.mrb[0].mxu0 %v1069
        %v2746 = vpop.f32.mrb[0].mxu0
        %v2747 = vadd.f32 %v2682, %v2746
        %v2748 = vpop.f32.mrb[0].mxu0
        %v2749 = vpop.f32.mrb[0].mxu0
        %v2750 = vadd.f32 %v2685, %v2749
        %v2751 = vpop.f32.mrb[0].mxu0
        %2752 = vmatprep.mubr.bf16.mxu0 %v1094
        %2753 = vmatmul.mubr.bf16.gmra.mrb[0].mxu0 %v1093
        %v2754 = vpop.f32.mrb[0].mxu0
        %v2755 = vadd.f32 %v2690, %v2754
        %v2756 = vpop.f32.mrb[0].mxu0
        %v2757 = vpop.f32.mrb[0].mxu0
        %v2758 = vadd.f32 %v2693, %v2757
        %v2759 = vpop.f32.mrb[0].mxu0
        %2760 = vmatprep.mubr.bf16.mxu0 %v1118
        %2761 = vmatmul.mubr.bf16.gmra.mrb[0].mxu0 %v1117
        %v2762 = vpop.f32.mrb[0].mxu0
        %v2763 = vadd.f32 %v2698, %v2762
        %v2764 = vpop.f32.mrb[0].mxu0
        %v2765 = vpop.f32.mrb[0].mxu0
        %v2766 = vadd.f32 %v2701, %v2765
        %v2767 = vpop.f32.mrb[0].mxu0
        %2768 = vdwg.mxu0
        %2769 = vmatprep.subr.bf16.mxu0 0
        %2770 = vmatpush1.bf16.msra.mxu0 %v2091
        %2771 = vmatprep.subr.bf16.mxu0 0
        %2772 = vmatpush1.bf16.msra.mxu0 %v2092
        %2773 = vmatprep.subr.bf16.mxu0 0
        %2774 = vmatpush1.bf16.msra.mxu0 %v2093
        %2775 = vmatprep.subr.bf16.mxu0 0
        %2776 = vmatpush1.bf16.msra.mxu0 %v2094
        %2777 = vmatprep.subr.bf16.mxu0 0
        %2778 = vmatpush1.bf16.msra.mxu0 %v2095
        %2779 = vmatprep.subr.bf16.mxu0 0
        %2780 = vmatpush1.bf16.msra.mxu0 %v2096
        %2781 = vmatprep.subr.bf16.mxu0 0
        %2782 = vmatpush1.bf16.msra.mxu0 %v2097
        %2783 = vmatprep.subr.bf16.mxu0 0
        %2784 = vmatpush1.bf16.msra.mxu0 %v2098
        %2785 = vmatprep.subr.bf16.mxu0 0
        %2786 = vmatpush1.bf16.msra.mxu0 %v2099
        %2787 = vmatprep.subr.bf16.mxu0 0
        %2788 = vmatpush1.bf16.msra.mxu0 %v2100
        %2789 = vmatprep.subr.bf16.mxu0 0
        %2790 = vmatpush1.bf16.msra.mxu0 %v2101
        %2791 = vmatprep.subr.bf16.mxu0 0
        %2792 = vmatpush1.bf16.msra.mxu0 %v2102
        %2793 = vmatprep.subr.bf16.mxu0 0
        %2794 = vmatpush1.bf16.msra.mxu0 %v2103
        %2795 = vmatprep.subr.bf16.mxu0 0
        %2796 = vmatpush1.bf16.msra.mxu0 %v2104
        %2797 = vmatprep.subr.bf16.mxu0 0
        %2798 = vmatpush1.bf16.msra.mxu0 %v2105
        %2799 = vmatprep.subr.bf16.mxu0 0
        %2800 = vmatpush1.bf16.msra.mxu0 %v2106
        %2801 = vmatprep.mubr.bf16.mxu0 %v1048
        %2802 = vmatmul.mubr.bf16.gmra.mrb[0].mxu0 %v1047
        %v2803 = vpop.f32.mrb[0].mxu0
        %v2804 = vadd.f32 %v2739, %v2803
        %v2805 = vpop.f32.mrb[0].mxu0
        %v2806 = vpop.f32.mrb[0].mxu0
        %v2807 = vadd.f32 %v2742, %v2806
        %v2808 = vpop.f32.mrb[0].mxu0
        %2809 = vmatprep.mubr.bf16.mxu0 %v1072
        %2810 = vmatmul.mubr.bf16.gmra.mrb[0].mxu0 %v1071
        %v2811 = vpop.f32.mrb[0].mxu0
        %v2812 = vadd.f32 %v2747, %v2811
        %v2813 = vpop.f32.mrb[0].mxu0
        %v2814 = vpop.f32.mrb[0].mxu0
        %v2815 = vadd.f32 %v2750, %v2814
        %v2816 = vpop.f32.mrb[0].mxu0
        %2817 = vmatprep.mubr.bf16.mxu0 %v1096
        %2818 = vmatmul.mubr.bf16.gmra.mrb[0].mxu0 %v1095
        %v2819 = vpop.f32.mrb[0].mxu0
        %v2820 = vadd.f32 %v2755, %v2819
        %v2821 = vpop.f32.mrb[0].mxu0
        %v2822 = vpop.f32.mrb[0].mxu0
        %v2823 = vadd.f32 %v2758, %v2822
        %v2824 = vpop.f32.mrb[0].mxu0
        %2825 = vmatprep.mubr.bf16.mxu0 %v1120
        %2826 = vmatmul.mubr.bf16.gmra.mrb[0].mxu0 %v1119
        %v2827 = vpop.f32.mrb[0].mxu0
        %v2828 = vadd.f32 %v2763, %v2827
        %v2829 = vpop.f32.mrb[0].mxu0
        %v2830 = vpop.f32.mrb[0].mxu0
        %v2831 = vadd.f32 %v2766, %v2830
        %v2832 = vpop.f32.mrb[0].mxu0
        %2833 = vdwg.mxu0
        %2834 = vmatprep.subr.bf16.mxu0 0
        %2835 = vmatpush1.bf16.msra.mxu0 %v2107
        %2836 = vmatprep.subr.bf16.mxu0 0
        %2837 = vmatpush1.bf16.msra.mxu0 %v2108
        %2838 = vmatprep.subr.bf16.mxu0 0
        %2839 = vmatpush1.bf16.msra.mxu0 %v2109
        %2840 = vmatprep.subr.bf16.mxu0 0
        %2841 = vmatpush1.bf16.msra.mxu0 %v2110
        %2842 = vmatprep.subr.bf16.mxu0 0
        %2843 = vmatpush1.bf16.msra.mxu0 %v2111
        %2844 = vmatprep.subr.bf16.mxu0 0
        %2845 = vmatpush1.bf16.msra.mxu0 %v2112
        %2846 = vmatprep.subr.bf16.mxu0 0
        %2847 = vmatpush1.bf16.msra.mxu0 %v2113
        %2848 = vmatprep.subr.bf16.mxu0 0
        %2849 = vmatpush1.bf16.msra.mxu0 %v2114
        %2850 = vmatprep.subr.bf16.mxu0 0
        %2851 = vmatpush1.bf16.msra.mxu0 %v2115
        %2852 = vmatprep.subr.bf16.mxu0 0
        %2853 = vmatpush1.bf16.msra.mxu0 %v2116
        %2854 = vmatprep.subr.bf16.mxu0 0
        %2855 = vmatpush1.bf16.msra.mxu0 %v2117
        %2856 = vmatprep.subr.bf16.mxu0 0
        %2857 = vmatpush1.bf16.msra.mxu0 %v2118
        %2858 = vmatprep.subr.bf16.mxu0 0
        %2859 = vmatpush1.bf16.msra.mxu0 %v2119
        %2860 = vmatprep.subr.bf16.mxu0 0
        %2861 = vmatpush1.bf16.msra.mxu0 %v2120
        %2862 = vmatprep.subr.bf16.mxu0 0
        %2863 = vmatpush1.bf16.msra.mxu0 %v2121
        %2864 = vmatprep.subr.bf16.mxu0 0
        %2865 = vmatpush1.bf16.msra.mxu0 %v2122
        %2866 = vmatprep.mubr.bf16.mxu0 %v1050
        %2867 = vmatmul.mubr.bf16.gmra.mrb[0].mxu0 %v1049
        %v2868 = vpop.f32.mrb[0].mxu0
        %v2869 = vadd.f32 %v2804, %v2868
        %v2870 = vpop.f32.mrb[0].mxu0
        %v2871 = vpop.f32.mrb[0].mxu0
        %v2872 = vadd.f32 %v2807, %v2871
        %v2873 = vpop.f32.mrb[0].mxu0
        %2874 = vmatprep.mubr.bf16.mxu0 %v1074
        %2875 = vmatmul.mubr.bf16.gmra.mrb[0].mxu0 %v1073
        %v2876 = vpop.f32.mrb[0].mxu0
        %v2877 = vadd.f32 %v2812, %v2876
        %v2878 = vpop.f32.mrb[0].mxu0
        %v2879 = vpop.f32.mrb[0].mxu0
        %v2880 = vadd.f32 %v2815, %v2879
        %v2881 = vpop.f32.mrb[0].mxu0
        %2882 = vmatprep.mubr.bf16.mxu0 %v1098
        %2883 = vmatmul.mubr.bf16.gmra.mrb[0].mxu0 %v1097
        %v2884 = vpop.f32.mrb[0].mxu0
        %v2885 = vadd.f32 %v2820, %v2884
        %v2886 = vpop.f32.mrb[0].mxu0
        %v2887 = vpop.f32.mrb[0].mxu0
        %v2888 = vadd.f32 %v2823, %v2887
        %v2889 = vpop.f32.mrb[0].mxu0
        %2890 = vmatprep.mubr.bf16.mxu0 %v1122
        %2891 = vmatmul.mubr.bf16.gmra.mrb[0].mxu0 %v1121
        %v2892 = vpop.f32.mrb[0].mxu0
        %v2893 = vadd.f32 %v2828, %v2892
        %v2894 = vpop.f32.mrb[0].mxu0
        %v2895 = vpop.f32.mrb[0].mxu0
        %v2896 = vadd.f32 %v2831, %v2895
        %v2897 = vpop.f32.mrb[0].mxu0
        %2898 = vdwg.mxu0
        %2899 = vmatprep.subr.bf16.mxu0 0
        %2900 = vmatpush1.bf16.msra.mxu0 %v2123
        %2901 = vmatprep.subr.bf16.mxu0 0
        %2902 = vmatpush1.bf16.msra.mxu0 %v2124
        %2903 = vmatprep.subr.bf16.mxu0 0
        %2904 = vmatpush1.bf16.msra.mxu0 %v2125
        %2905 = vmatprep.subr.bf16.mxu0 0
        %2906 = vmatpush1.bf16.msra.mxu0 %v2126
        %2907 = vmatprep.subr.bf16.mxu0 0
        %2908 = vmatpush1.bf16.msra.mxu0 %v2127
        %2909 = vmatprep.subr.bf16.mxu0 0
        %2910 = vmatpush1.bf16.msra.mxu0 %v2128
        %2911 = vmatprep.subr.bf16.mxu0 0
        %2912 = vmatpush1.bf16.msra.mxu0 %v2129
        %2913 = vmatprep.subr.bf16.mxu0 0
        %2914 = vmatpush1.bf16.msra.mxu0 %v2130
        %2915 = vmatprep.subr.bf16.mxu0 0
        %2916 = vmatpush1.bf16.msra.mxu0 %v2131
        %2917 = vmatprep.subr.bf16.mxu0 0
        %2918 = vmatpush1.bf16.msra.mxu0 %v2132
        %2919 = vmatprep.subr.bf16.mxu0 0
        %2920 = vmatpush1.bf16.msra.mxu0 %v2133
        %2921 = vmatprep.subr.bf16.mxu0 0
        %2922 = vmatpush1.bf16.msra.mxu0 %v2134
        %2923 = vmatprep.subr.bf16.mxu0 0
        %2924 = vmatpush1.bf16.msra.mxu0 %v2135
        %2925 = vmatprep.subr.bf16.mxu0 0
        %2926 = vmatpush1.bf16.msra.mxu0 %v2136
        %2927 = vmatprep.subr.bf16.mxu0 0
        %2928 = vmatpush1.bf16.msra.mxu0 %v2137
        %2929 = vmatprep.subr.bf16.mxu0 0
        %2930 = vmatpush1.bf16.msra.mxu0 %v2138
        %2931 = vmatprep.mubr.bf16.mxu0 %v1052
        %2932 = vmatmul.mubr.bf16.gmra.mrb[0].mxu0 %v1051
        %v2933 = vpop.f32.mrb[0].mxu0
        %v2934 = vadd.f32 %v2869, %v2933
        %v2935 = vpop.f32.mrb[0].mxu0
        %v2936 = vpop.f32.mrb[0].mxu0
        %v2937 = vadd.f32 %v2872, %v2936
        %v2938 = vpop.f32.mrb[0].mxu0
        %2939 = vmatprep.mubr.bf16.mxu0 %v1076
        %2940 = vmatmul.mubr.bf16.gmra.mrb[0].mxu0 %v1075
        %v2941 = vpop.f32.mrb[0].mxu0
        %v2942 = vadd.f32 %v2877, %v2941
        %v2943 = vpop.f32.mrb[0].mxu0
        %v2944 = vpop.f32.mrb[0].mxu0
        %v2945 = vadd.f32 %v2880, %v2944
        %v2946 = vpop.f32.mrb[0].mxu0
        %2947 = vmatprep.mubr.bf16.mxu0 %v1100
        %2948 = vmatmul.mubr.bf16.gmra.mrb[0].mxu0 %v1099
        %v2949 = vpop.f32.mrb[0].mxu0
        %v2950 = vadd.f32 %v2885, %v2949
        %v2951 = vpop.f32.mrb[0].mxu0
        %v2952 = vpop.f32.mrb[0].mxu0
        %v2953 = vadd.f32 %v2888, %v2952
        %v2954 = vpop.f32.mrb[0].mxu0
        %2955 = vmatprep.mubr.bf16.mxu0 %v1124
        %2956 = vmatmul.mubr.bf16.gmra.mrb[0].mxu0 %v1123
        %v2957 = vpop.f32.mrb[0].mxu0
        %v2958 = vadd.f32 %v2893, %v2957
        %v2959 = vpop.f32.mrb[0].mxu0
        %v2960 = vpop.f32.mrb[0].mxu0
        %v2961 = vadd.f32 %v2896, %v2960
        %v2962 = vpop.f32.mrb[0].mxu0
        %2963 = vdwg.mxu0
        %2964 = vmatprep.subr.bf16.mxu0 0
        %2965 = vmatpush1.bf16.msra.mxu0 %v2139
        %2966 = vmatprep.subr.bf16.mxu0 0
        %2967 = vmatpush1.bf16.msra.mxu0 %v2140
        %2968 = vmatprep.subr.bf16.mxu0 0
        %2969 = vmatpush1.bf16.msra.mxu0 %v2141
        %2970 = vmatprep.subr.bf16.mxu0 0
        %2971 = vmatpush1.bf16.msra.mxu0 %v2142
        %2972 = vmatprep.subr.bf16.mxu0 0
        %2973 = vmatpush1.bf16.msra.mxu0 %v2143
        %2974 = vmatprep.subr.bf16.mxu0 0
        %2975 = vmatpush1.bf16.msra.mxu0 %v2144
        %2976 = vmatprep.subr.bf16.mxu0 0
        %2977 = vmatpush1.bf16.msra.mxu0 %v2145
        %2978 = vmatprep.subr.bf16.mxu0 0
        %2979 = vmatpush1.bf16.msra.mxu0 %v2146
        %2980 = vmatprep.subr.bf16.mxu0 0
        %2981 = vmatpush1.bf16.msra.mxu0 %v2147
        %2982 = vmatprep.subr.bf16.mxu0 0
        %2983 = vmatpush1.bf16.msra.mxu0 %v2148
        %2984 = vmatprep.subr.bf16.mxu0 0
        %2985 = vmatpush1.bf16.msra.mxu0 %v2149
        %2986 = vmatprep.subr.bf16.mxu0 0
        %2987 = vmatpush1.bf16.msra.mxu0 %v2150
        %2988 = vmatprep.subr.bf16.mxu0 0
        %2989 = vmatpush1.bf16.msra.mxu0 %v2151
        %2990 = vmatprep.subr.bf16.mxu0 0
        %2991 = vmatpush1.bf16.msra.mxu0 %v2152
        %2992 = vmatprep.subr.bf16.mxu0 0
        %2993 = vmatpush1.bf16.msra.mxu0 %v2153
        %2994 = vmatprep.subr.bf16.mxu0 0
        %2995 = vmatpush1.bf16.msra.mxu0 %v2154
        %2996 = vmatprep.mubr.bf16.mxu0 %v1054
        %2997 = vmatmul.mubr.bf16.gmra.mrb[0].mxu0 %v1053
        %v2998 = vpop.f32.mrb[0].mxu0
        %v2999 = vadd.f32 %v2934, %v2998
        %v3000 = vpop.f32.mrb[0].mxu0
        %v3001 = vpop.f32.mrb[0].mxu0
        %v3002 = vadd.f32 %v2937, %v3001
        %v3003 = vpop.f32.mrb[0].mxu0
        %3004 = vmatprep.mubr.bf16.mxu0 %v1078
        %3005 = vmatmul.mubr.bf16.gmra.mrb[0].mxu0 %v1077
        %v3006 = vpop.f32.mrb[0].mxu0
        %v3007 = vadd.f32 %v2942, %v3006
        %v3008 = vpop.f32.mrb[0].mxu0
        %v3009 = vpop.f32.mrb[0].mxu0
        %v3010 = vadd.f32 %v2945, %v3009
        %v3011 = vpop.f32.mrb[0].mxu0
        %3012 = vmatprep.mubr.bf16.mxu0 %v1102
        %3013 = vmatmul.mubr.bf16.gmra.mrb[0].mxu0 %v1101
        %v3014 = vpop.f32.mrb[0].mxu0
        %v3015 = vadd.f32 %v2950, %v3014
        %v3016 = vpop.f32.mrb[0].mxu0
        %v3017 = vpop.f32.mrb[0].mxu0
        %v3018 = vadd.f32 %v2953, %v3017
        %v3019 = vpop.f32.mrb[0].mxu0
        %3020 = vmatprep.mubr.bf16.mxu0 %v1126
        %3021 = vmatmul.mubr.bf16.gmra.mrb[0].mxu0 %v1125
        %v3022 = vpop.f32.mrb[0].mxu0
        %v3023 = vadd.f32 %v2958, %v3022
        %v3024 = vpop.f32.mrb[0].mxu0
        %v3025 = vpop.f32.mrb[0].mxu0
        %v3026 = vadd.f32 %v2961, %v3025
        %v3027 = vpop.f32.mrb[0].mxu0
        %3028 = vdwg.mxu0
        %3029 = vmatprep.subr.bf16.mxu0 0
        %3030 = vmatpush1.bf16.msra.mxu0 %v2155
        %3031 = vmatprep.subr.bf16.mxu0 0
        %3032 = vmatpush1.bf16.msra.mxu0 %v2156
        %3033 = vmatprep.subr.bf16.mxu0 0
        %3034 = vmatpush1.bf16.msra.mxu0 %v2157
        %3035 = vmatprep.subr.bf16.mxu0 0
        %3036 = vmatpush1.bf16.msra.mxu0 %v2158
        %3037 = vmatprep.subr.bf16.mxu0 0
        %3038 = vmatpush1.bf16.msra.mxu0 %v2159
        %3039 = vmatprep.subr.bf16.mxu0 0
        %3040 = vmatpush1.bf16.msra.mxu0 %v2160
        %3041 = vmatprep.subr.bf16.mxu0 0
        %3042 = vmatpush1.bf16.msra.mxu0 %v2161
        %3043 = vmatprep.subr.bf16.mxu0 0
        %3044 = vmatpush1.bf16.msra.mxu0 %v2162
        %3045 = vmatprep.subr.bf16.mxu0 0
        %3046 = vmatpush1.bf16.msra.mxu0 %v2163
        %3047 = vmatprep.subr.bf16.mxu0 0
        %3048 = vmatpush1.bf16.msra.mxu0 %v2164
        %3049 = vmatprep.subr.bf16.mxu0 0
        %3050 = vmatpush1.bf16.msra.mxu0 %v2165
        %3051 = vmatprep.subr.bf16.mxu0 0
        %3052 = vmatpush1.bf16.msra.mxu0 %v2166
        %3053 = vmatprep.subr.bf16.mxu0 0
        %3054 = vmatpush1.bf16.msra.mxu0 %v2167
        %3055 = vmatprep.subr.bf16.mxu0 0
        %3056 = vmatpush1.bf16.msra.mxu0 %v2168
        %3057 = vmatprep.subr.bf16.mxu0 0
        %3058 = vmatpush1.bf16.msra.mxu0 %v2169
        %3059 = vmatprep.subr.bf16.mxu0 0
        %3060 = vmatpush1.bf16.msra.mxu0 %v2170
        %3061 = vmatprep.mubr.bf16.mxu0 %v1056
        %3062 = vmatmul.mubr.bf16.gmra.mrb[0].mxu0 %v1055
        %v3063 = vpop.f32.mrb[0].mxu0
        %v3064 = vadd.f32 %v2999, %v3063
        %v3065 = vpop.f32.mrb[0].mxu0
        %v3066 = vpop.f32.mrb[0].mxu0
        %v3067 = vadd.f32 %v3002, %v3066
        %v3068 = vpop.f32.mrb[0].mxu0
        %3069 = vmatprep.mubr.bf16.mxu0 %v1080
        %3070 = vmatmul.mubr.bf16.gmra.mrb[0].mxu0 %v1079
        %v3071 = vpop.f32.mrb[0].mxu0
        %v3072 = vadd.f32 %v3007, %v3071
        %v3073 = vpop.f32.mrb[0].mxu0
        %v3074 = vpop.f32.mrb[0].mxu0
        %v3075 = vadd.f32 %v3010, %v3074
        %v3076 = vpop.f32.mrb[0].mxu0
        %3077 = vmatprep.mubr.bf16.mxu0 %v1104
        %3078 = vmatmul.mubr.bf16.gmra.mrb[0].mxu0 %v1103
        %v3079 = vpop.f32.mrb[0].mxu0
        %v3080 = vadd.f32 %v3015, %v3079
        %v3081 = vpop.f32.mrb[0].mxu0
        %v3082 = vpop.f32.mrb[0].mxu0
        %v3083 = vadd.f32 %v3018, %v3082
        %v3084 = vpop.f32.mrb[0].mxu0
        %3085 = vmatprep.mubr.bf16.mxu0 %v1128
        %3086 = vmatmul.mubr.bf16.gmra.mrb[0].mxu0 %v1127
        %v3087 = vpop.f32.mrb[0].mxu0
        %v3088 = vadd.f32 %v3023, %v3087
        %v3089 = vpop.f32.mrb[0].mxu0
        %v3090 = vpop.f32.mrb[0].mxu0
        %v3091 = vadd.f32 %v3026, %v3090
        %v3092 = vpop.f32.mrb[0].mxu0
        %3093 = vdwg.mxu0
        %3094 = vmatprep.subr.bf16.mxu0 0
        %3095 = vmatpush1.bf16.msra.mxu0 %v2171
        %3096 = vmatprep.subr.bf16.mxu0 0
        %3097 = vmatpush1.bf16.msra.mxu0 %v2172
        %3098 = vmatprep.subr.bf16.mxu0 0
        %3099 = vmatpush1.bf16.msra.mxu0 %v2173
        %3100 = vmatprep.subr.bf16.mxu0 0
        %3101 = vmatpush1.bf16.msra.mxu0 %v2174
        %3102 = vmatprep.subr.bf16.mxu0 0
        %3103 = vmatpush1.bf16.msra.mxu0 %v2175
        %3104 = vmatprep.subr.bf16.mxu0 0
        %3105 = vmatpush1.bf16.msra.mxu0 %v2176
        %3106 = vmatprep.subr.bf16.mxu0 0
        %3107 = vmatpush1.bf16.msra.mxu0 %v2177
        %3108 = vmatprep.subr.bf16.mxu0 0
        %3109 = vmatpush1.bf16.msra.mxu0 %v2178
        %3110 = vmatprep.subr.bf16.mxu0 0
        %3111 = vmatpush1.bf16.msra.mxu0 %v2179
        %3112 = vmatprep.subr.bf16.mxu0 0
        %3113 = vmatpush1.bf16.msra.mxu0 %v2180
        %3114 = vmatprep.subr.bf16.mxu0 0
        %3115 = vmatpush1.bf16.msra.mxu0 %v2181
        %3116 = vmatprep.subr.bf16.mxu0 0
        %3117 = vmatpush1.bf16.msra.mxu0 %v2182
        %3118 = vmatprep.subr.bf16.mxu0 0
        %3119 = vmatpush1.bf16.msra.mxu0 %v2183
        %3120 = vmatprep.subr.bf16.mxu0 0
        %3121 = vmatpush1.bf16.msra.mxu0 %v2184
        %3122 = vmatprep.subr.bf16.mxu0 0
        %3123 = vmatpush1.bf16.msra.mxu0 %v2185
        %3124 = vmatprep.subr.bf16.mxu0 0
        %3125 = vmatpush1.bf16.msra.mxu0 %v2186
        %3126 = vmatprep.mubr.bf16.mxu0 %v1058
        %3127 = vmatmul.mubr.bf16.gmra.mrb[0].mxu0 %v1057
        %v3128 = vpop.f32.mrb[0].mxu0
        %v3129 = vadd.f32 %v3064, %v3128
        %v3130 = vpop.f32.mrb[0].mxu0
        %v3131 = vpop.f32.mrb[0].mxu0
        %v3132 = vadd.f32 %v3067, %v3131
        %v3133 = vpop.f32.mrb[0].mxu0
        %3134 = vmatprep.mubr.bf16.mxu0 %v1082
        %3135 = vmatmul.mubr.bf16.gmra.mrb[0].mxu0 %v1081
        %v3136 = vpop.f32.mrb[0].mxu0
        %v3137 = vadd.f32 %v3072, %v3136
        %v3138 = vpop.f32.mrb[0].mxu0
        %v3139 = vpop.f32.mrb[0].mxu0
        %v3140 = vadd.f32 %v3075, %v3139
        %v3141 = vpop.f32.mrb[0].mxu0
        %3142 = vmatprep.mubr.bf16.mxu0 %v1106
        %3143 = vmatmul.mubr.bf16.gmra.mrb[0].mxu0 %v1105
        %v3144 = vpop.f32.mrb[0].mxu0
        %v3145 = vadd.f32 %v3080, %v3144
        %v3146 = vpop.f32.mrb[0].mxu0
        %v3147 = vpop.f32.mrb[0].mxu0
        %v3148 = vadd.f32 %v3083, %v3147
        %v3149 = vpop.f32.mrb[0].mxu0
        %3150 = vmatprep.mubr.bf16.mxu0 %v1130
        %3151 = vmatmul.mubr.bf16.gmra.mrb[0].mxu0 %v1129
        %v3152 = vpop.f32.mrb[0].mxu0
        %v3153 = vadd.f32 %v3088, %v3152
        %v3154 = vpop.f32.mrb[0].mxu0
        %v3155 = vpop.f32.mrb[0].mxu0
        %v3156 = vadd.f32 %v3091, %v3155
        %v3157 = vpop.f32.mrb[0].mxu0
        %3158 = vdwg.mxu0
        %v3159 = vld [vmem:[#allocation8] sm:$0x1]
        %3160 = vst [vmem:[%s257] sm:$0x1] %v3159
        %3161 = vst [vmem:[%s257 + $0x1] sm:$0xff] %v3129
        %3162 = vst [vmem:[%s257 + $0x9] sm:$0xff] %v3132
        %3163 = vst [vmem:[%s257 + $0x11] sm:$0xff] %v3137
        %3164 = vst [vmem:[%s257 + $0x19] sm:$0xff] %v3140
        %3165 = vst [vmem:[%s257 + $0x21] sm:$0xff] %v3145
        %3166 = vst [vmem:[%s257 + $0x29] sm:$0xff] %v3148
        %3167 = vst [vmem:[%s257 + $0x31] sm:$0xff] %v3153
        %3168 = vst [vmem:[%s257 + $0x39] sm:$0xff] %v3156
        %3169 = vst [vmem:[%s257 + $0x41] sm:$0x7f] 0.0
        %s3170 = sand.u32 %s120, 1
        %s3171 = scalar_lea.sflag [#allocation4], %s3170
        %s3172 = sand.u32 %s120, 1
        %s3173 = smul.addr %s3172, 72
        %s3174 = scalar_lea.vmem [#allocation10], %s3173
        // Predicated region
        $region53: #{tpu_custom_call.1} parent=35 // pred_check
          %p3175 = pneg %p130
        $region54: #{tpu_custom_call.1} parent=35 // pred_check_branch
          %3177 = sbr.rel (%p3175) target = $region56
        $region55: #{tpu_custom_call.1} parent=35 // pred_region
          %s3179 = ssub.s32 1152, 1152
          %3180 = vsyncadd %s3171, %s3179
          %s3181 = smul.addr %s23, 9
          %s3182 = smul.addr %s3181, 128
          %s3183 = scalar_lea.hbm %s4, %s3182
          %s3184 = sshll.u32 %s3174, 4
          %s3185 = int_to_ptr.vmem [resolvable:$true] %s3184
          %3190 = dma.vmem_to_hbm [thread:$0]  %s3185, 1152, %s3183, %s3171, 128, 128, 8
        $region56: #{tpu_custom_call.1} parent=35 // pred_fallthru
          _
      $region36: #{tpu_custom_call.1} parent=5 // pred_fallthru
        _
      %p3191 = scmp.le.s32.totalorder 2, %s18
      // Predicated region
      $region57: #{tpu_custom_call.1} parent=5 // pred_check
        %p3192 = pneg %p3191
      $region58: #{tpu_custom_call.1} parent=5 // pred_check_branch
        %3194 = sbr.rel (%p3192) target = $region60
      $region59: #{tpu_custom_call.1} parent=5 // pred_region
        %s3195 = ssub.s32 %s18, 2
        // Predicated region
        $region61: #{tpu_custom_call.1} parent=59 // pred_check
          %p3196 = pneg %p136
        $region62: #{tpu_custom_call.1} parent=59 // pred_check_branch
          %3198 = sbr.rel (%p3196) target = $region64
        $region63: #{tpu_custom_call.1} parent=59 // pred_region
          %s3199 = sand.u32 %s121, 1
          %s3200 = scalar_lea.sflag [#allocation4], %s3199
          %s3201 = sand.u32 %s121, 1
          %s3202 = smul.addr %s3201, 72
          %s3203 = scalar_lea.vmem [#allocation10], %s3202
          %3204 = dma.done %s3200, 1152
        $region64: #{tpu_custom_call.1} parent=59 // pred_fallthru
          _
      $region60: #{tpu_custom_call.1} parent=5 // pred_fallthru
        _
    $region6: #{tpu_custom_call.1} parent=1 // loop_footer
      %s22 = sadd.s32 1, %s18
    $region7: #{tpu_custom_call.1} parent=1 // loop_footer_branch
      %17 = sbr.rel target = $region3
    $region8: #{tpu_custom_call.1} parent=1 // loop_exit
      _
    %3205 = vsyncpa [#allocation3], 1
    %s3206 = scalar_lea.sflag [#allocation3], 1
    %3207 = vsyncpa %s3206, 1
    %3208 = vsyncpa [#allocation6], 1
    %3209 = vsyncpa [#allocation9], 1
    %3210 = vsyncpa [#allocation4], 1
    %s3211 = scalar_lea.sflag [#allocation4], 1
    %3212 = vsyncpa %s3211, 1

</llo_original>
